<compile_context>
chip_gen: v7x
topology: tpu7x:2x2x1
jax: 0.10.0
libtpu: 0.0.40
codegen_flags: <defaults>
</compile_context>

<pallas_src>
import functools

import jax
import jax.numpy as jnp
import numpy as np
from jax.experimental import pallas as pl
from jax.experimental.pallas import tpu as pltpu


# ----------------------------------------------------------------------------
# Fused kernel: K/V projection (once per batch) + query-tiled attention + MLP
# ----------------------------------------------------------------------------
def _attn_prop_kernel(xf_ref, xq_ref,
                      wk_ref, bk_ref, wv_ref, bv_ref,
                      wq_ref, bq_ref, wm_ref, bm_ref,
                      w1x_ref, w1m_ref, b1_ref, w2_ref, b2_ref,
                      out_ref,
                      k_scr, v_scr, msg_scr,
                      *, n_heads, kv_chunk, exp_dtype):
    N, D = k_scr.shape
    hd = D // n_heads
    j = pl.program_id(1)

    # ---- K/V projections for the full sequence, once per batch (j == 0) ----
    # Full-width (chunk, D) x (D, D) matmuls; head-major column order is baked
    # into wk/wv.  Chunking bounds the (chunk, D) f32 temporaries.
    @pl.when(j == 0)
    def _():
        for kk in range(N // kv_chunk):                       # static chunk loop
            sl = slice(kk * kv_chunk, (kk + 1) * kv_chunk)
            xs = xf_ref[0, sl, :]                             # (chunk, D) bf16
            kc = jnp.dot(xs, wk_ref[...],
                         preferred_element_type=jnp.float32) + bk_ref[...]
            vc = jnp.dot(xs, wv_ref[...],
                         preferred_element_type=jnp.float32) + bv_ref[...]
            k_scr[sl, :] = kc.astype(jnp.bfloat16)
            v_scr[sl, :] = vc.astype(jnp.bfloat16)

    # ---- Q projection: one full-width (TQ, D) x (D, D) matmul ----
    xb = xq_ref[0]                                            # (TQ, D) bf16
    q = jnp.dot(xb, wq_ref[...],
                preferred_element_type=jnp.float32) + bq_ref[...]   # scale folded
    qb = q.astype(jnp.bfloat16)                               # head-major columns

    # ---- per-head attention; each head writes its slice of the msg scratch ----
    for h in range(n_heads):                                  # static, no carried value
        cs = slice(h * hd, (h + 1) * hd)
        qh = qb[:, cs]                                        # (TQ, hd) bf16
        kh = k_scr[:, cs]                                     # (N, hd)  bf16
        vh = v_scr[:, cs]                                     # (N, hd)  bf16

        # scores: contract the last axes (no explicit K transpose materialized)
        s = jax.lax.dot_general(qh, kh,
                                dimension_numbers=(((1,), (1,)), ((), ())),
                                preferred_element_type=jnp.float32)   # (TQ, N)
        s = s - jnp.max(s, axis=-1, keepdims=True)
        p = jnp.exp(s.astype(exp_dtype))                      # bf16 exp on v6e/v7x
        denom = jnp.sum(p.astype(jnp.float32), axis=-1, keepdims=True)

        mh = jnp.dot(p.astype(jnp.bfloat16), vh,
                     preferred_element_type=jnp.float32)      # (TQ, hd)
        # deferred softmax normalization on the small (TQ, hd) tensor (EUP rcp)
        mh = mh * pl.reciprocal(denom, approx=True)
        msg_scr[:, cs] = mh.astype(jnp.bfloat16)

    # ---- merge: ONE (TQ, D) x (D, D) matmul with full contraction depth ----
    msg = msg_scr[...]                                        # (TQ, D) bf16
    message = jnp.dot(msg, wm_ref[...],
                      preferred_element_type=jnp.float32) + bm_ref[...]

    # ---- MLP on cat([x, message]) without concatenating (BN folded) ----
    h1 = (jnp.dot(xb, w1x_ref[...], preferred_element_type=jnp.float32)
          + jnp.dot(message.astype(jnp.bfloat16), w1m_ref[...],
                    preferred_element_type=jnp.float32)
          + b1_ref[...])
    h1 = jnp.maximum(h1, 0.0)                                 # ReLU in f32
    out_ref[0] = (jnp.dot(h1.astype(jnp.bfloat16), w2_ref[...],
                          preferred_element_type=jnp.float32) + b2_ref[...])


# ----------------------------------------------------------------------------
# Parameter init (deterministic, PyTorch-shaped)
# ----------------------------------------------------------------------------
def init_params(key, feature_dim):
    d = feature_dim
    ks = jax.random.split(key, 11)
    w = lambda k, shape: 0.1 * jax.random.normal(k, shape, dtype=jnp.float32)
    return {
        "wq": w(ks[0], (d, d)), "bq": w(ks[1], (d,)),
        "wk": w(ks[2], (d, d)), "bk": w(ks[3], (d,)),
        "wv": w(ks[4], (d, d)), "bv": w(ks[5], (d,)),
        "wm": w(ks[6], (d, d)), "bm": w(ks[7], (d,)),
        "w1": w(ks[8], (2 * d, 2 * d)), "b1": w(ks[9], (2 * d,)),
        "bn_gamma": jnp.ones((2 * d,), jnp.float32),
        "bn_beta": jnp.zeros((2 * d,), jnp.float32),
        "bn_rm": jnp.zeros((2 * d,), jnp.float32),
        "bn_rv": jnp.ones((2 * d,), jnp.float32),
        "w2": w(ks[10], (d, 2 * d)),
        "b2": jnp.zeros((d,), jnp.float32),    # nn.init.constant_(bias, 0.0)
    }


# ----------------------------------------------------------------------------
# Weight preparation (head-major column ordering, scale / BN folding, bf16)
# ----------------------------------------------------------------------------
def _prep_params(params, n_heads, feature_dim):
    D = feature_dim
    hd = D // n_heads
    eps = 1e-5
    bf16, f32 = jnp.bfloat16, jnp.float32

    # PyTorch projection output channel c maps to (within-head dim d, head h)
    # via c = d * n_heads + h.  We want head-major columns: c' = h * hd + d.
    perm = jnp.asarray([d * n_heads + h for h in range(n_heads) for d in range(hd)],
                       dtype=jnp.int32)

    def proj_w(w, scale=1.0):   # (D_out, D_in) -> (D_in, D) head-major cols
        return (w[perm, :].T * scale).astype(bf16)

    def proj_b(b, scale=1.0):
        return (b[perm] * scale).reshape(1, D).astype(f32)

    inv_sqrt = 1.0 / (hd ** 0.5)             # folded into the Q projection
    p = {
        "wq": proj_w(params["wq"], inv_sqrt), "bq": proj_b(params["bq"], inv_sqrt),
        "wk": proj_w(params["wk"]),           "bk": proj_b(params["bk"]),
        "wv": proj_w(params["wv"]),           "bv": proj_b(params["bv"]),
        # merge reads head-major message columns, writes normal channel order
        "wm": params["wm"][:, perm].T.astype(bf16),            # (D, D)
        "bm": params["bm"].reshape(1, D).astype(f32),
    }
    # MLP layer 1 split into x / message halves, eval-mode BatchNorm folded in.
    bn_scale = params["bn_gamma"] / jnp.sqrt(params["bn_rv"] + eps)
    bn_shift = params["bn_beta"] - params["bn_rm"] * bn_scale
    w1t = params["w1"].T                                       # (2D_in, 2D_out)
    p["w1x"] = (w1t[:D, :] * bn_scale[None, :]).astype(bf16)   # (D, 2D)
    p["w1m"] = (w1t[D:, :] * bn_scale[None, :]).astype(bf16)   # (D, 2D)
    p["b1"] = (params["b1"] * bn_scale + bn_shift).reshape(1, 2 * D).astype(f32)
    p["w2"] = params["w2"].T.astype(bf16)                      # (2D, D)
    p["b2"] = params["b2"].reshape(1, D).astype(f32)
    return p


def _const_map(ndim):
    return lambda b, j: (0,) * ndim


def _pick_tile(n, target, mult=16):
    """Largest divisor of n that is <= target and a multiple of `mult` (or n)."""
    t = min(target, n)
    for cand in range(t, 0, -1):
        if n % cand == 0 and (cand == n or cand % mult == 0):
            return cand
    return n


def _vmem_limit_bytes():
    # Raise the scoped VMEM limit toward the chip's capacity (review item),
    # with headroom; falls back conservatively if the query is unavailable.
    try:
        cap = int(pltpu.get_tpu_info().vmem_capacity_bytes)
    except Exception:
        cap = 64 * 1024 * 1024
    return min(96 * 1024 * 1024, max(32 * 1024 * 1024, cap * 3 // 4))


# ----------------------------------------------------------------------------
# Wrappers
# ----------------------------------------------------------------------------
def attentional_propagation_nld(x_nld, params, n_heads, *, tq=512,
                                exp_dtype=jnp.bfloat16):
    """Channels-last entry point. x_nld: (B, N, D) f32 -> (B, N, D) f32.

    exp_dtype: jnp.bfloat16 on v6e/v7x (bf16 EUP), jnp.float32 on v5e.
    """
    B, N, D = x_nld.shape
    assert D % n_heads == 0
    p = _prep_params(params, n_heads, D)

    TQ = _pick_tile(N, tq, mult=16)
    KV_CHUNK = _pick_tile(N, 512, mult=16)

    # x is only ever consumed as a bf16 MXU operand -> feed it as bf16.
    x_bf = x_nld.astype(jnp.bfloat16)

    weights = (p["wk"], p["bk"], p["wv"], p["bv"],
               p["wq"], p["bq"], p["wm"], p["bm"],
               p["w1x"], p["w1m"], p["b1"], p["w2"], p["b2"])

    in_specs = ([
        # full-sequence view of x (block index changes only with b)
        pl.BlockSpec((1, N, D), lambda b, j: (b, 0, 0)),
        # query-row tile
        pl.BlockSpec((1, TQ, D), lambda b, j: (b, j, 0)),
    ] + [pl.BlockSpec(w.shape, _const_map(w.ndim)) for w in weights])

    cost = pl.CostEstimate(
        flops=int(B * (20 * N * D * D + 4 * N * N * D)),
        transcendentals=int(B * n_heads * N * N),
        bytes_accessed=int(2 * 2 * B * N * D + 4 * B * N * D + 2 * 20 * D * D))

    out = pl.pallas_call(
        functools.partial(_attn_prop_kernel, n_heads=n_heads,
                          kv_chunk=KV_CHUNK, exp_dtype=exp_dtype),
        out_shape=jax.ShapeDtypeStruct((B, N, D), jnp.float32),
        grid=(B, N // TQ),
        in_specs=in_specs,
        out_specs=pl.BlockSpec((1, TQ, D), lambda b, j: (b, j, 0)),
        scratch_shapes=[
            pltpu.VMEM((N, D), jnp.bfloat16),     # K (single copy, per batch)
            pltpu.VMEM((N, D), jnp.bfloat16),     # V
            pltpu.VMEM((TQ, D), jnp.bfloat16),    # per-tile merged message
        ],
        compiler_params=pltpu.CompilerParams(
            # b parallel (megacore), j arbitrary (K/V scratch carried across j)
            dimension_semantics=("parallel", "arbitrary"),
            vmem_limit_bytes=_vmem_limit_bytes()),
        cost_estimate=cost,
    )(x_bf, x_bf, *weights)
    return out


def attentional_propagation(x, params, n_heads, *, tq=512,
                            exp_dtype=jnp.bfloat16):
    """PyTorch Conv1d layout. x: (B, D, N) f32 -> (B, D, N) f32.

    The two transposes are pure layout plumbing for the PyTorch interface;
    channels-last callers should use `attentional_propagation_nld` directly.
    """
    x_nld = jnp.transpose(x, (0, 2, 1))
    out = attentional_propagation_nld(x_nld, params, n_heads, tq=tq,
                                      exp_dtype=exp_dtype)
    return jnp.transpose(out, (0, 2, 1))


# ----------------------------------------------------------------------------
# Pure-JAX f32 reference (mirrors the PyTorch forward, for verification)
# ----------------------------------------------------------------------------
def reference(x, p, n_heads):
    B, D, N = x.shape
    head_dim = D // n_heads
    conv = lambda w, b, inp: jnp.einsum("oc,bcn->bon", w, inp) + b[None, :, None]

    q = conv(p["wq"], p["bq"], x).reshape(B, head_dim, n_heads, N)
    k = conv(p["wk"], p["bk"], x).reshape(B, head_dim, n_heads, N)
    v = conv(p["wv"], p["bv"], x).reshape(B, head_dim, n_heads, N)
    scores = jnp.einsum("bdhn,bdhm->bhnm", q, k) / (head_dim ** 0.5)
    attn = jax.nn.softmax(scores, axis=-1)
    msg = jnp.einsum("bhnm,bdhm->bdhn", attn, v).reshape(B, D, N)
    message = conv(p["wm"], p["bm"], msg)

    y = jnp.concatenate([x, message], axis=1)
    h1 = conv(p["w1"], p["b1"], y)
    eps = 1e-5
    scale = p["bn_gamma"] / jnp.sqrt(p["bn_rv"] + eps)
    shift = p["bn_beta"] - p["bn_rm"] * scale
    h1 = h1 * scale[None, :, None] + shift[None, :, None]
    h1 = jnp.maximum(h1, 0.0)
    return conv(p["w2"], p["b2"], h1)


# ----------------------------------------------------------------------------
if __name__ == "__main__":
    B, FEATURE_DIM, N_HEADS, SEQ = 2, 32, 4, 32

    key = jax.random.PRNGKey(0)
    kx, kp = jax.random.split(key)
    x = jax.random.normal(kx, (B, FEATURE_DIM, SEQ), dtype=jnp.float32)
    params = init_params(kp, FEATURE_DIM)

    # tq=16 exercises the query tiling (2 tiles of 16 rows) at this demo size.
    out = attentional_propagation(x, params, N_HEADS, tq=16)
    out = jax.block_until_ready(out)

    ref = jax.block_until_ready(reference(x, params, N_HEADS))
    # bf16 MXU operands, bf16 exp and approx reciprocal vs. an f32 reference.
    np.testing.assert_allclose(np.asarray(out), np.asarray(ref),
                               rtol=3e-2, atol=3e-2)
    print("KERNEL_OK")
</pallas_src>

<mosaic_0001>
module attributes {stable_mosaic.version = 11 : i64} {
  func.func @_attn_prop_kernel(%arg0: i32, %arg1: i32, %arg2: memref<1x32x32xbf16, #tpu.memory_space<vmem>>, %arg3: memref<1x16x32xbf16, #tpu.memory_space<vmem>>, %arg4: memref<32x32xbf16, #tpu.memory_space<vmem>>, %arg5: memref<1x32xf32, #tpu.memory_space<vmem>>, %arg6: memref<32x32xbf16, #tpu.memory_space<vmem>>, %arg7: memref<1x32xf32, #tpu.memory_space<vmem>>, %arg8: memref<32x32xbf16, #tpu.memory_space<vmem>>, %arg9: memref<1x32xf32, #tpu.memory_space<vmem>>, %arg10: memref<32x32xbf16, #tpu.memory_space<vmem>>, %arg11: memref<1x32xf32, #tpu.memory_space<vmem>>, %arg12: memref<32x64xbf16, #tpu.memory_space<vmem>>, %arg13: memref<32x64xbf16, #tpu.memory_space<vmem>>, %arg14: memref<1x64xf32, #tpu.memory_space<vmem>>, %arg15: memref<64x32xbf16, #tpu.memory_space<vmem>>, %arg16: memref<1x32xf32, #tpu.memory_space<vmem>>, %arg17: memref<1x16x32xf32, #tpu.memory_space<vmem>>, %arg18: memref<32x32xbf16, #tpu.memory_space<vmem>>, %arg19: memref<32x32xbf16, #tpu.memory_space<vmem>>, %arg20: memref<16x32xbf16, #tpu.memory_space<vmem>>) attributes {dimension_semantics = [#tpu.dimension_semantics<parallel>, #tpu.dimension_semantics<arbitrary>], iteration_bounds = array<i64: 2, 2>, scalar_prefetch = 0 : i64, scratch_operands = 3 : i64, tpu.core_type = #tpu.core_type<tc>, window_params = [{transform_indices = @transform_0, window_bounds = array<i64: 1, 32, 32>}, {transform_indices = @transform_1, window_bounds = array<i64: 1, 16, 32>}, {pipeline_mode = #tpu.pipeline_mode<synchronous>, transform_indices = @transform_2, window_bounds = array<i64: 32, 32>}, {pipeline_mode = #tpu.pipeline_mode<synchronous>, transform_indices = @transform_3, window_bounds = array<i64: 1, 32>}, {pipeline_mode = #tpu.pipeline_mode<synchronous>, transform_indices = @transform_4, window_bounds = array<i64: 32, 32>}, {pipeline_mode = #tpu.pipeline_mode<synchronous>, transform_indices = @transform_5, window_bounds = array<i64: 1, 32>}, {pipeline_mode = #tpu.pipeline_mode<synchronous>, transform_indices = @transform_6, window_bounds = array<i64: 32, 32>}, {pipeline_mode = #tpu.pipeline_mode<synchronous>, transform_indices = @transform_7, window_bounds = array<i64: 1, 32>}, {pipeline_mode = #tpu.pipeline_mode<synchronous>, transform_indices = @transform_8, window_bounds = array<i64: 32, 32>}, {pipeline_mode = #tpu.pipeline_mode<synchronous>, transform_indices = @transform_9, window_bounds = array<i64: 1, 32>}, {pipeline_mode = #tpu.pipeline_mode<synchronous>, transform_indices = @transform_10, window_bounds = array<i64: 32, 64>}, {pipeline_mode = #tpu.pipeline_mode<synchronous>, transform_indices = @transform_11, window_bounds = array<i64: 32, 64>}, {pipeline_mode = #tpu.pipeline_mode<synchronous>, transform_indices = @transform_12, window_bounds = array<i64: 1, 64>}, {pipeline_mode = #tpu.pipeline_mode<synchronous>, transform_indices = @transform_13, window_bounds = array<i64: 64, 32>}, {pipeline_mode = #tpu.pipeline_mode<synchronous>, transform_indices = @transform_14, window_bounds = array<i64: 1, 32>}, {transform_indices = @transform_15, window_bounds = array<i64: 1, 16, 32>}]} {
    %c0_i32 = arith.constant 0 : i32
    %0 = arith.cmpi eq, %arg1, %c0_i32 : i32
    %1 = arith.extui %0 : i1 to i32
    %c0_i32_0 = arith.constant 0 : i32
    %2 = arith.cmpi ne, %1, %c0_i32_0 : i32
    scf.if %2 {
      %c0_68 = arith.constant 0 : index
      %c0_69 = arith.constant 0 : index
      %c0_70 = arith.constant 0 : index
      %113 = vector.load %arg2[%c0_68, %c0_69, %c0_70] : memref<1x32x32xbf16, #tpu.memory_space<vmem>>, vector<1x32x32xbf16>
      %114 = vector.shape_cast %113 : vector<1x32x32xbf16> to vector<32x32xbf16>
      %c0_71 = arith.constant 0 : index
      %c0_72 = arith.constant 0 : index
      %115 = vector.load %arg4[%c0_71, %c0_72] : memref<32x32xbf16, #tpu.memory_space<vmem>>, vector<32x32xbf16>
      %cst_73 = arith.constant dense<0.000000e+00> : vector<32x32xf32>
      %116 = tpu.matmul %114, %115, %cst_73 {dimension_numbers = #tpu.dot_dimension_numbers<[1], [0], [0], [1], [0, 0, 1, 1], [], []>} : vector<32x32xbf16>, vector<32x32xbf16>, vector<32x32xf32> -> vector<32x32xf32>
      %c0_74 = arith.constant 0 : index
      %c0_75 = arith.constant 0 : index
      %117 = vector.load %arg5[%c0_74, %c0_75] : memref<1x32xf32, #tpu.memory_space<vmem>>, vector<1x32xf32>
      %118 = vector.broadcast %117 : vector<1x32xf32> to vector<32x32xf32>
      %119 = arith.addf %116, %118 : vector<32x32xf32>
      %c0_76 = arith.constant 0 : index
      %c0_77 = arith.constant 0 : index
      %120 = vector.load %arg6[%c0_76, %c0_77] : memref<32x32xbf16, #tpu.memory_space<vmem>>, vector<32x32xbf16>
      %cst_78 = arith.constant dense<0.000000e+00> : vector<32x32xf32>
      %121 = tpu.matmul %114, %120, %cst_78 {dimension_numbers = #tpu.dot_dimension_numbers<[1], [0], [0], [1], [0, 0, 1, 1], [], []>} : vector<32x32xbf16>, vector<32x32xbf16>, vector<32x32xf32> -> vector<32x32xf32>
      %c0_79 = arith.constant 0 : index
      %c0_80 = arith.constant 0 : index
      %122 = vector.load %arg7[%c0_79, %c0_80] : memref<1x32xf32, #tpu.memory_space<vmem>>, vector<1x32xf32>
      %123 = vector.broadcast %122 : vector<1x32xf32> to vector<32x32xf32>
      %124 = arith.addf %121, %123 : vector<32x32xf32>
      %125 = arith.truncf %119 : vector<32x32xf32> to vector<32x32xbf16>
      %c0_81 = arith.constant 0 : index
      %c0_82 = arith.constant 0 : index
      %126 = vector.load %arg18[%c0_81, %c0_82] : memref<32x32xbf16, #tpu.memory_space<vmem>>, vector<32x32xbf16>
      tpu.vector_store %arg18[%c0_81, %c0_82], %125 {strides = array<i32>} : memref<32x32xbf16, #tpu.memory_space<vmem>>, vector<32x32xbf16>,
      %127 = arith.truncf %124 : vector<32x32xf32> to vector<32x32xbf16>
      %c0_83 = arith.constant 0 : index
      %c0_84 = arith.constant 0 : index
      %128 = vector.load %arg19[%c0_83, %c0_84] : memref<32x32xbf16, #tpu.memory_space<vmem>>, vector<32x32xbf16>
      tpu.vector_store %arg19[%c0_83, %c0_84], %127 {strides = array<i32>} : memref<32x32xbf16, #tpu.memory_space<vmem>>, vector<32x32xbf16>,
    } else {
    }
    %c0 = arith.constant 0 : index
    %c0_1 = arith.constant 0 : index
    %c0_2 = arith.constant 0 : index
    %3 = vector.load %arg3[%c0, %c0_1, %c0_2] : memref<1x16x32xbf16, #tpu.memory_space<vmem>>, vector<1x16x32xbf16>
    %4 = vector.shape_cast %3 : vector<1x16x32xbf16> to vector<16x32xbf16>
    %c0_3 = arith.constant 0 : index
    %c0_4 = arith.constant 0 : index
    %5 = vector.load %arg8[%c0_3, %c0_4] : memref<32x32xbf16, #tpu.memory_space<vmem>>, vector<32x32xbf16>
    %cst = arith.constant dense<0.000000e+00> : vector<16x32xf32>
    %6 = tpu.matmul %4, %5, %cst {dimension_numbers = #tpu.dot_dimension_numbers<[1], [0], [0], [1], [0, 0, 1, 1], [], []>} : vector<16x32xbf16>, vector<32x32xbf16>, vector<16x32xf32> -> vector<16x32xf32>
    %c0_5 = arith.constant 0 : index
    %c0_6 = arith.constant 0 : index
    %7 = vector.load %arg9[%c0_5, %c0_6] : memref<1x32xf32, #tpu.memory_space<vmem>>, vector<1x32xf32>
    %8 = vector.broadcast %7 : vector<1x32xf32> to vector<16x32xf32>
    %9 = arith.addf %6, %8 : vector<16x32xf32>
    %10 = arith.truncf %9 : vector<16x32xf32> to vector<16x32xbf16>
    %11 = vector.extract_strided_slice %10 {offsets = [0, 0], sizes = [16, 8], strides = [1, 1]} : vector<16x32xbf16> to vector<16x8xbf16>
    %c0_7 = arith.constant 0 : index
    %c0_8 = arith.constant 0 : index
    %12 = vector.load %arg18[%c0_7, %c0_8] : memref<32x32xbf16, #tpu.memory_space<vmem>>, vector<32x8xbf16>
    %c0_9 = arith.constant 0 : index
    %c0_10 = arith.constant 0 : index
    %13 = vector.load %arg19[%c0_9, %c0_10] : memref<32x32xbf16, #tpu.memory_space<vmem>>, vector<32x8xbf16>
    %cst_11 = arith.constant dense<0.000000e+00> : vector<16x32xf32>
    %14 = tpu.matmul %11, %12, %cst_11 {dimension_numbers = #tpu.dot_dimension_numbers<[1], [1], [0], [0], [0, 0, 1, 0], [], []>} : vector<16x8xbf16>, vector<32x8xbf16>, vector<16x32xf32> -> vector<16x32xf32>
    %cst_12 = arith.constant dense<0xFF800000> : vector<16xf32>
    %15 = vector.multi_reduction <maximumf>, %14, %cst_12 [1] : vector<16x32xf32> to vector<16xf32>
    %16 = vector.shape_cast %15 : vector<16xf32> to vector<16x1xf32>
    %17 = vector.broadcast %16 : vector<16x1xf32> to vector<16x32xf32>
    %18 = arith.subf %14, %17 : vector<16x32xf32>
    %19 = arith.truncf %18 : vector<16x32xf32> to vector<16x32xbf16>
    %20 = math.exp %19 : vector<16x32xbf16>
    %21 = arith.extf %20 : vector<16x32xbf16> to vector<16x32xf32>
    %cst_13 = arith.constant dense<0.000000e+00> : vector<16xf32>
    %22 = vector.multi_reduction <add>, %21, %cst_13 [1] : vector<16x32xf32> to vector<16xf32>
    %23 = vector.shape_cast %22 : vector<16xf32> to vector<16x1xf32>
    %cst_14 = arith.constant dense<0.000000e+00> : vector<16x8xf32>
    %24 = tpu.matmul %20, %13, %cst_14 {dimension_numbers = #tpu.dot_dimension_numbers<[1], [0], [0], [1], [0, 0, 1, 1], [], []>} : vector<16x32xbf16>, vector<32x8xbf16>, vector<16x8xf32> -> vector<16x8xf32>
    %25 = tpu.reciprocal %23 {approx = true} : vector<16x1xf32> -> vector<16x1xf32>
    %26 = vector.broadcast %25 : vector<16x1xf32> to vector<16x8xf32>
    %27 = arith.mulf %24, %26 : vector<16x8xf32>
    %28 = arith.truncf %27 : vector<16x8xf32> to vector<16x8xbf16>
    %c0_15 = arith.constant 0 : index
    %c0_16 = arith.constant 0 : index
    %29 = vector.load %arg20[%c0_15, %c0_16] : memref<16x32xbf16, #tpu.memory_space<vmem>>, vector<16x8xbf16>
    tpu.vector_store %arg20[%c0_15, %c0_16], %28 {strides = array<i32>} : memref<16x32xbf16, #tpu.memory_space<vmem>>, vector<16x8xbf16>,
    %30 = vector.extract_strided_slice %10 {offsets = [0, 8], sizes = [16, 8], strides = [1, 1]} : vector<16x32xbf16> to vector<16x8xbf16>
    %c0_17 = arith.constant 0 : index
    %c8 = arith.constant 8 : index
    %31 = vector.load %arg18[%c0_17, %c8] : memref<32x32xbf16, #tpu.memory_space<vmem>>, vector<32x8xbf16>
    %c0_18 = arith.constant 0 : index
    %c8_19 = arith.constant 8 : index
    %32 = vector.load %arg19[%c0_18, %c8_19] : memref<32x32xbf16, #tpu.memory_space<vmem>>, vector<32x8xbf16>
    %cst_20 = arith.constant dense<0.000000e+00> : vector<16x32xf32>
    %33 = tpu.matmul %30, %31, %cst_20 {dimension_numbers = #tpu.dot_dimension_numbers<[1], [1], [0], [0], [0, 0, 1, 0], [], []>} : vector<16x8xbf16>, vector<32x8xbf16>, vector<16x32xf32> -> vector<16x32xf32>
    %cst_21 = arith.constant dense<0xFF800000> : vector<16xf32>
    %34 = vector.multi_reduction <maximumf>, %33, %cst_21 [1] : vector<16x32xf32> to vector<16xf32>
    %35 = vector.shape_cast %34 : vector<16xf32> to vector<16x1xf32>
    %36 = vector.broadcast %35 : vector<16x1xf32> to vector<16x32xf32>
    %37 = arith.subf %33, %36 : vector<16x32xf32>
    %38 = arith.truncf %37 : vector<16x32xf32> to vector<16x32xbf16>
    %39 = math.exp %38 : vector<16x32xbf16>
    %40 = arith.extf %39 : vector<16x32xbf16> to vector<16x32xf32>
    %cst_22 = arith.constant dense<0.000000e+00> : vector<16xf32>
    %41 = vector.multi_reduction <add>, %40, %cst_22 [1] : vector<16x32xf32> to vector<16xf32>
    %42 = vector.shape_cast %41 : vector<16xf32> to vector<16x1xf32>
    %cst_23 = arith.constant dense<0.000000e+00> : vector<16x8xf32>
    %43 = tpu.matmul %39, %32, %cst_23 {dimension_numbers = #tpu.dot_dimension_numbers<[1], [0], [0], [1], [0, 0, 1, 1], [], []>} : vector<16x32xbf16>, vector<32x8xbf16>, vector<16x8xf32> -> vector<16x8xf32>
    %44 = tpu.reciprocal %42 {approx = true} : vector<16x1xf32> -> vector<16x1xf32>
    %45 = vector.broadcast %44 : vector<16x1xf32> to vector<16x8xf32>
    %46 = arith.mulf %43, %45 : vector<16x8xf32>
    %47 = arith.truncf %46 : vector<16x8xf32> to vector<16x8xbf16>
    %c0_24 = arith.constant 0 : index
    %c8_25 = arith.constant 8 : index
    %48 = vector.load %arg20[%c0_24, %c8_25] : memref<16x32xbf16, #tpu.memory_space<vmem>>, vector<16x8xbf16>
    tpu.vector_store %arg20[%c0_24, %c8_25], %47 {strides = array<i32>} : memref<16x32xbf16, #tpu.memory_space<vmem>>, vector<16x8xbf16>,
    %49 = vector.extract_strided_slice %10 {offsets = [0, 16], sizes = [16, 8], strides = [1, 1]} : vector<16x32xbf16> to vector<16x8xbf16>
    %c0_26 = arith.constant 0 : index
    %c16 = arith.constant 16 : index
    %50 = vector.load %arg18[%c0_26, %c16] : memref<32x32xbf16, #tpu.memory_space<vmem>>, vector<32x8xbf16>
    %c0_27 = arith.constant 0 : index
    %c16_28 = arith.constant 16 : index
    %51 = vector.load %arg19[%c0_27, %c16_28] : memref<32x32xbf16, #tpu.memory_space<vmem>>, vector<32x8xbf16>
    %cst_29 = arith.constant dense<0.000000e+00> : vector<16x32xf32>
    %52 = tpu.matmul %49, %50, %cst_29 {dimension_numbers = #tpu.dot_dimension_numbers<[1], [1], [0], [0], [0, 0, 1, 0], [], []>} : vector<16x8xbf16>, vector<32x8xbf16>, vector<16x32xf32> -> vector<16x32xf32>
    %cst_30 = arith.constant dense<0xFF800000> : vector<16xf32>
    %53 = vector.multi_reduction <maximumf>, %52, %cst_30 [1] : vector<16x32xf32> to vector<16xf32>
    %54 = vector.shape_cast %53 : vector<16xf32> to vector<16x1xf32>
    %55 = vector.broadcast %54 : vector<16x1xf32> to vector<16x32xf32>
    %56 = arith.subf %52, %55 : vector<16x32xf32>
    %57 = arith.truncf %56 : vector<16x32xf32> to vector<16x32xbf16>
    %58 = math.exp %57 : vector<16x32xbf16>
    %59 = arith.extf %58 : vector<16x32xbf16> to vector<16x32xf32>
    %cst_31 = arith.constant dense<0.000000e+00> : vector<16xf32>
    %60 = vector.multi_reduction <add>, %59, %cst_31 [1] : vector<16x32xf32> to vector<16xf32>
    %61 = vector.shape_cast %60 : vector<16xf32> to vector<16x1xf32>
    %cst_32 = arith.constant dense<0.000000e+00> : vector<16x8xf32>
    %62 = tpu.matmul %58, %51, %cst_32 {dimension_numbers = #tpu.dot_dimension_numbers<[1], [0], [0], [1], [0, 0, 1, 1], [], []>} : vector<16x32xbf16>, vector<32x8xbf16>, vector<16x8xf32> -> vector<16x8xf32>
    %63 = tpu.reciprocal %61 {approx = true} : vector<16x1xf32> -> vector<16x1xf32>
    %64 = vector.broadcast %63 : vector<16x1xf32> to vector<16x8xf32>
    %65 = arith.mulf %62, %64 : vector<16x8xf32>
    %66 = arith.truncf %65 : vector<16x8xf32> to vector<16x8xbf16>
    %c0_33 = arith.constant 0 : index
    %c16_34 = arith.constant 16 : index
    %67 = vector.load %arg20[%c0_33, %c16_34] : memref<16x32xbf16, #tpu.memory_space<vmem>>, vector<16x8xbf16>
    tpu.vector_store %arg20[%c0_33, %c16_34], %66 {strides = array<i32>} : memref<16x32xbf16, #tpu.memory_space<vmem>>, vector<16x8xbf16>,
    %68 = vector.extract_strided_slice %10 {offsets = [0, 24], sizes = [16, 8], strides = [1, 1]} : vector<16x32xbf16> to vector<16x8xbf16>
    %c0_35 = arith.constant 0 : index
    %c24 = arith.constant 24 : index
    %69 = vector.load %arg18[%c0_35, %c24] : memref<32x32xbf16, #tpu.memory_space<vmem>>, vector<32x8xbf16>
    %c0_36 = arith.constant 0 : index
    %c24_37 = arith.constant 24 : index
    %70 = vector.load %arg19[%c0_36, %c24_37] : memref<32x32xbf16, #tpu.memory_space<vmem>>, vector<32x8xbf16>
    %cst_38 = arith.constant dense<0.000000e+00> : vector<16x32xf32>
    %71 = tpu.matmul %68, %69, %cst_38 {dimension_numbers = #tpu.dot_dimension_numbers<[1], [1], [0], [0], [0, 0, 1, 0], [], []>} : vector<16x8xbf16>, vector<32x8xbf16>, vector<16x32xf32> -> vector<16x32xf32>
    %cst_39 = arith.constant dense<0xFF800000> : vector<16xf32>
    %72 = vector.multi_reduction <maximumf>, %71, %cst_39 [1] : vector<16x32xf32> to vector<16xf32>
    %73 = vector.shape_cast %72 : vector<16xf32> to vector<16x1xf32>
    %74 = vector.broadcast %73 : vector<16x1xf32> to vector<16x32xf32>
    %75 = arith.subf %71, %74 : vector<16x32xf32>
    %76 = arith.truncf %75 : vector<16x32xf32> to vector<16x32xbf16>
    %77 = math.exp %76 : vector<16x32xbf16>
    %78 = arith.extf %77 : vector<16x32xbf16> to vector<16x32xf32>
    %cst_40 = arith.constant dense<0.000000e+00> : vector<16xf32>
    %79 = vector.multi_reduction <add>, %78, %cst_40 [1] : vector<16x32xf32> to vector<16xf32>
    %80 = vector.shape_cast %79 : vector<16xf32> to vector<16x1xf32>
    %cst_41 = arith.constant dense<0.000000e+00> : vector<16x8xf32>
    %81 = tpu.matmul %77, %70, %cst_41 {dimension_numbers = #tpu.dot_dimension_numbers<[1], [0], [0], [1], [0, 0, 1, 1], [], []>} : vector<16x32xbf16>, vector<32x8xbf16>, vector<16x8xf32> -> vector<16x8xf32>
    %82 = tpu.reciprocal %80 {approx = true} : vector<16x1xf32> -> vector<16x1xf32>
    %83 = vector.broadcast %82 : vector<16x1xf32> to vector<16x8xf32>
    %84 = arith.mulf %81, %83 : vector<16x8xf32>
    %85 = arith.truncf %84 : vector<16x8xf32> to vector<16x8xbf16>
    %c0_42 = arith.constant 0 : index
    %c24_43 = arith.constant 24 : index
    %86 = vector.load %arg20[%c0_42, %c24_43] : memref<16x32xbf16, #tpu.memory_space<vmem>>, vector<16x8xbf16>
    tpu.vector_store %arg20[%c0_42, %c24_43], %85 {strides = array<i32>} : memref<16x32xbf16, #tpu.memory_space<vmem>>, vector<16x8xbf16>,
    %c0_44 = arith.constant 0 : index
    %c0_45 = arith.constant 0 : index
    %87 = vector.load %arg20[%c0_44, %c0_45] : memref<16x32xbf16, #tpu.memory_space<vmem>>, vector<16x32xbf16>
    %c0_46 = arith.constant 0 : index
    %c0_47 = arith.constant 0 : index
    %88 = vector.load %arg10[%c0_46, %c0_47] : memref<32x32xbf16, #tpu.memory_space<vmem>>, vector<32x32xbf16>
    %cst_48 = arith.constant dense<0.000000e+00> : vector<16x32xf32>
    %89 = tpu.matmul %87, %88, %cst_48 {dimension_numbers = #tpu.dot_dimension_numbers<[1], [0], [0], [1], [0, 0, 1, 1], [], []>} : vector<16x32xbf16>, vector<32x32xbf16>, vector<16x32xf32> -> vector<16x32xf32>
    %c0_49 = arith.constant 0 : index
    %c0_50 = arith.constant 0 : index
    %90 = vector.load %arg11[%c0_49, %c0_50] : memref<1x32xf32, #tpu.memory_space<vmem>>, vector<1x32xf32>
    %91 = vector.broadcast %90 : vector<1x32xf32> to vector<16x32xf32>
    %92 = arith.addf %89, %91 : vector<16x32xf32>
    %c0_51 = arith.constant 0 : index
    %c0_52 = arith.constant 0 : index
    %93 = vector.load %arg12[%c0_51, %c0_52] : memref<32x64xbf16, #tpu.memory_space<vmem>>, vector<32x64xbf16>
    %cst_53 = arith.constant dense<0.000000e+00> : vector<16x64xf32>
    %94 = tpu.matmul %4, %93, %cst_53 {dimension_numbers = #tpu.dot_dimension_numbers<[1], [0], [0], [1], [0, 0, 1, 1], [], []>} : vector<16x32xbf16>, vector<32x64xbf16>, vector<16x64xf32> -> vector<16x64xf32>
    %95 = arith.truncf %92 : vector<16x32xf32> to vector<16x32xbf16>
    %c0_54 = arith.constant 0 : index
    %c0_55 = arith.constant 0 : index
    %96 = vector.load %arg13[%c0_54, %c0_55] : memref<32x64xbf16, #tpu.memory_space<vmem>>, vector<32x64xbf16>
    %cst_56 = arith.constant dense<0.000000e+00> : vector<16x64xf32>
    %97 = tpu.matmul %95, %96, %cst_56 {dimension_numbers = #tpu.dot_dimension_numbers<[1], [0], [0], [1], [0, 0, 1, 1], [], []>} : vector<16x32xbf16>, vector<32x64xbf16>, vector<16x64xf32> -> vector<16x64xf32>
    %98 = arith.addf %94, %97 : vector<16x64xf32>
    %c0_57 = arith.constant 0 : index
    %c0_58 = arith.constant 0 : index
    %99 = vector.load %arg14[%c0_57, %c0_58] : memref<1x64xf32, #tpu.memory_space<vmem>>, vector<1x64xf32>
    %100 = vector.broadcast %99 : vector<1x64xf32> to vector<16x64xf32>
    %101 = arith.addf %98, %100 : vector<16x64xf32>
    %cst_59 = arith.constant 0.000000e+00 : f32
    %102 = vector.broadcast %cst_59 : f32 to vector<16x64xf32>
    %103 = arith.maximumf %101, %102 : vector<16x64xf32>
    %104 = arith.truncf %103 : vector<16x64xf32> to vector<16x64xbf16>
    %c0_60 = arith.constant 0 : index
    %c0_61 = arith.constant 0 : index
    %105 = vector.load %arg15[%c0_60, %c0_61] : memref<64x32xbf16, #tpu.memory_space<vmem>>, vector<64x32xbf16>
    %cst_62 = arith.constant dense<0.000000e+00> : vector<16x32xf32>
    %106 = tpu.matmul %104, %105, %cst_62 {dimension_numbers = #tpu.dot_dimension_numbers<[1], [0], [0], [1], [0, 0, 1, 1], [], []>} : vector<16x64xbf16>, vector<64x32xbf16>, vector<16x32xf32> -> vector<16x32xf32>
    %c0_63 = arith.constant 0 : index
    %c0_64 = arith.constant 0 : index
    %107 = vector.load %arg16[%c0_63, %c0_64] : memref<1x32xf32, #tpu.memory_space<vmem>>, vector<1x32xf32>
    %108 = vector.broadcast %107 : vector<1x32xf32> to vector<16x32xf32>
    %109 = arith.addf %106, %108 : vector<16x32xf32>
    %c0_65 = arith.constant 0 : index
    %c0_66 = arith.constant 0 : index
    %c0_67 = arith.constant 0 : index
    %110 = vector.load %arg17[%c0_65, %c0_66, %c0_67] : memref<1x16x32xf32, #tpu.memory_space<vmem>>, vector<1x16x32xf32>
    %111 = vector.shape_cast %110 : vector<1x16x32xf32> to vector<16x32xf32>
    %112 = vector.shape_cast %109 : vector<16x32xf32> to vector<1x16x32xf32>
    tpu.vector_store %arg17[%c0_65, %c0_66, %c0_67], %112 {strides = array<i32>} : memref<1x16x32xf32, #tpu.memory_space<vmem>>, vector<1x16x32xf32>,
    return
  }
  func.func @transform_0(%arg0: i32, %arg1: i32) -> (i32, i32, i32) {
    %c0_i32 = arith.constant 0 : i32
    %c0_i32_0 = arith.constant 0 : i32
    %c0_i32_1 = arith.constant 0 : i32
    return %arg0, %c0_i32, %c0_i32_0 : i32, i32, i32
  }
  func.func @transform_1(%arg0: i32, %arg1: i32) -> (i32, i32, i32) {
    %c0_i32 = arith.constant 0 : i32
    %c0_i32_0 = arith.constant 0 : i32
    return %arg0, %arg1, %c0_i32 : i32, i32, i32
  }
  func.func @transform_2(%arg0: i32, %arg1: i32) -> (i32, i32) {
    %c0_i32 = arith.constant 0 : i32
    %c0_i32_0 = arith.constant 0 : i32
    %c0_i32_1 = arith.constant 0 : i32
    return %c0_i32, %c0_i32_0 : i32, i32
  }
  func.func @transform_3(%arg0: i32, %arg1: i32) -> (i32, i32) {
    %c0_i32 = arith.constant 0 : i32
    %c0_i32_0 = arith.constant 0 : i32
    %c0_i32_1 = arith.constant 0 : i32
    return %c0_i32, %c0_i32_0 : i32, i32
  }
  func.func @transform_4(%arg0: i32, %arg1: i32) -> (i32, i32) {
    %c0_i32 = arith.constant 0 : i32
    %c0_i32_0 = arith.constant 0 : i32
    %c0_i32_1 = arith.constant 0 : i32
    return %c0_i32, %c0_i32_0 : i32, i32
  }
  func.func @transform_5(%arg0: i32, %arg1: i32) -> (i32, i32) {
    %c0_i32 = arith.constant 0 : i32
    %c0_i32_0 = arith.constant 0 : i32
    %c0_i32_1 = arith.constant 0 : i32
    return %c0_i32, %c0_i32_0 : i32, i32
  }
  func.func @transform_6(%arg0: i32, %arg1: i32) -> (i32, i32) {
    %c0_i32 = arith.constant 0 : i32
    %c0_i32_0 = arith.constant 0 : i32
    %c0_i32_1 = arith.constant 0 : i32
    return %c0_i32, %c0_i32_0 : i32, i32
  }
  func.func @transform_7(%arg0: i32, %arg1: i32) -> (i32, i32) {
    %c0_i32 = arith.constant 0 : i32
    %c0_i32_0 = arith.constant 0 : i32
    %c0_i32_1 = arith.constant 0 : i32
    return %c0_i32, %c0_i32_0 : i32, i32
  }
  func.func @transform_8(%arg0: i32, %arg1: i32) -> (i32, i32) {
    %c0_i32 = arith.constant 0 : i32
    %c0_i32_0 = arith.constant 0 : i32
    %c0_i32_1 = arith.constant 0 : i32
    return %c0_i32, %c0_i32_0 : i32, i32
  }
  func.func @transform_9(%arg0: i32, %arg1: i32) -> (i32, i32) {
    %c0_i32 = arith.constant 0 : i32
    %c0_i32_0 = arith.constant 0 : i32
    %c0_i32_1 = arith.constant 0 : i32
    return %c0_i32, %c0_i32_0 : i32, i32
  }
  func.func @transform_10(%arg0: i32, %arg1: i32) -> (i32, i32) {
    %c0_i32 = arith.constant 0 : i32
    %c0_i32_0 = arith.constant 0 : i32
    %c0_i32_1 = arith.constant 0 : i32
    return %c0_i32, %c0_i32_0 : i32, i32
  }
  func.func @transform_11(%arg0: i32, %arg1: i32) -> (i32, i32) {
    %c0_i32 = arith.constant 0 : i32
    %c0_i32_0 = arith.constant 0 : i32
    %c0_i32_1 = arith.constant 0 : i32
    return %c0_i32, %c0_i32_0 : i32, i32
  }
  func.func @transform_12(%arg0: i32, %arg1: i32) -> (i32, i32) {
    %c0_i32 = arith.constant 0 : i32
    %c0_i32_0 = arith.constant 0 : i32
    %c0_i32_1 = arith.constant 0 : i32
    return %c0_i32, %c0_i32_0 : i32, i32
  }
  func.func @transform_13(%arg0: i32, %arg1: i32) -> (i32, i32) {
    %c0_i32 = arith.constant 0 : i32
    %c0_i32_0 = arith.constant 0 : i32
    %c0_i32_1 = arith.constant 0 : i32
    return %c0_i32, %c0_i32_0 : i32, i32
  }
  func.func @transform_14(%arg0: i32, %arg1: i32) -> (i32, i32) {
    %c0_i32 = arith.constant 0 : i32
    %c0_i32_0 = arith.constant 0 : i32
    %c0_i32_1 = arith.constant 0 : i32
    return %c0_i32, %c0_i32_0 : i32, i32
  }
  func.func @transform_15(%arg0: i32, %arg1: i32) -> (i32, i32, i32) {
    %c0_i32 = arith.constant 0 : i32
    %c0_i32_0 = arith.constant 0 : i32
    return %arg0, %arg1, %c0_i32 : i32, i32, i32
  }
}

</mosaic_0001>

<llo_original>
// kernel: tpu_custom_call.1
$region0: #{tpu_custom_call.1}
  #allocation0 [shape = 'u32[]', space=smem, size = 0x4, offset = 0x4, fixed_abs, tag = 'smem constant byte address 0x4 - core index']
  #allocation1 [shape = 'u32[144,128]{1,0:T(1,128)}', space=vmem, size = 0x12000, scoped, tag = 'internal scratch']
  #allocation2 [shape = 'bf16[32,32]{1,0:T(16,128)(2,1)}', space=vmem, size = 0x2000, scoped, tag = 'scratch operand']
  #allocation3 [shape = 'bf16[32,32]{1,0:T(16,128)(2,1)}', space=vmem, size = 0x2000, scoped, tag = 'scratch operand']
  #allocation4 [shape = 'bf16[16,32]{1,0:T(16,128)(2,1)}', space=vmem, size = 0x1000, scoped, tag = 'scratch operand']
  %s0 = inlined_call_operand.vmem [shape: bf16[2,32,32], index: 0, kind: input, shape index: {}]
  %s1 = inlined_call_operand.hbm [shape: bf16[2,32,32], index: 1, kind: input, shape index: {}]
  %s2 = inlined_call_operand.vmem [shape: bf16[32,32], index: 2, kind: input, shape index: {}]
  %s3 = inlined_call_operand.vmem [shape: f32[1,32], index: 3, kind: input, shape index: {}]
  %s4 = inlined_call_operand.hbm [shape: bf16[32,32], index: 4, kind: input, shape index: {}]
  %s5 = inlined_call_operand.vmem [shape: f32[1,32], index: 5, kind: input, shape index: {}]
  %s6 = inlined_call_operand.hbm [shape: bf16[32,32], index: 6, kind: input, shape index: {}]
  %s7 = inlined_call_operand.hbm [shape: f32[1,32], index: 7, kind: input, shape index: {}]
  %s8 = inlined_call_operand.hbm [shape: bf16[32,32], index: 8, kind: input, shape index: {}]
  %s9 = inlined_call_operand.hbm [shape: f32[1,32], index: 9, kind: input, shape index: {}]
  %s10 = inlined_call_operand.vmem [shape: bf16[32,64], index: 10, kind: input, shape index: {}]
  %s11 = inlined_call_operand.hbm [shape: bf16[32,64], index: 11, kind: input, shape index: {}]
  %s12 = inlined_call_operand.vmem [shape: f32[1,64], index: 12, kind: input, shape index: {}]
  %s13 = inlined_call_operand.vmem [shape: bf16[64,32], index: 13, kind: input, shape index: {}]
  %s14 = inlined_call_operand.vmem [shape: f32[1,32], index: 14, kind: input, shape index: {}]
  %s15 = inlined_call_operand.hbm [shape: f32[2,32,32], index: 15, kind: output, shape index: {}]
  %s16 = sld [smem:[#allocation0]]
  $region125: #{tpu_custom_call.1} parent=0
    _
  %s18 = ssub.s32 1, %s16
  %s19 = scalar_select 0, %s18, %s16
  $region1: #{tpu_custom_call.1} parent=0
    #allocation5 [shape = 'u8[8192]{0}', space=vmem, size = 0x2000, scoped, tag = 'input window, operand 1']
    #allocation6 [shape = 's32[2]{0}', space=sflag, size = 0x8, scoped, tag = 'scoped memory for tpu_custom_call.1']
    #allocation7 [shape = 's32[2]{0}', space=sflag, size = 0x8, scoped, tag = 'scoped memory for tpu_custom_call.1']
    #allocation8 [shape = 'u8[8192]{0}', space=vmem, size = 0x2000, scoped, tag = 'input window, operand 4, single buffered']
    #allocation9 [shape = 's32[1]{0}', space=sflag, size = 0x4, scoped, tag = 'scoped memory for tpu_custom_call.1']
    #allocation10 [shape = 'u8[8192]{0}', space=vmem, size = 0x2000, scoped, tag = 'input window, operand 6, single buffered']
    #allocation11 [shape = 'u8[512]{0}', space=vmem, size = 0x400, scoped, tag = 'input window, operand 7, single buffered']
    #allocation12 [shape = 's32[1]{0}', space=sflag, size = 0x4, scoped, tag = 'scoped memory for tpu_custom_call.1']
    #allocation13 [shape = 'u8[8192]{0}', space=vmem, size = 0x2000, scoped, tag = 'input window, operand 8, single buffered']
    #allocation14 [shape = 'u8[512]{0}', space=vmem, size = 0x400, scoped, tag = 'input window, operand 9, single buffered']
    #allocation15 [shape = 's32[1]{0}', space=sflag, size = 0x4, scoped, tag = 'scoped memory for tpu_custom_call.1']
    #allocation16 [shape = 'u8[8192]{0}', space=vmem, size = 0x2000, scoped, tag = 'input window, operand 11, single buffered']
    #allocation17 [shape = 'u8[16384]{0}', space=vmem, size = 0x4000, scoped, tag = 'output window, operand 0']
    %20 = vsyncpa [#allocation6], 0
    %s21 = scalar_lea.sflag [#allocation6], 1
    %22 = vsyncpa %s21, 0
    %23 = vsyncpa [#allocation9], 0
    %24 = vsyncpa [#allocation12], 0
    %25 = vsyncpa [#allocation15], 0
    %26 = vsyncpa [#allocation7], 0
    %s27 = scalar_lea.sflag [#allocation7], 1
    %28 = vsyncpa %s27, 0
    loop: start=0, step=1, limit=6
    $region2: #{tpu_custom_call.1} parent=1 // loop_pre_header
      _
    $region3: #{tpu_custom_call.1} parent=1 // loop_header
      %s30 = sphi 0, %s34
      %p31 = scmp.ge.s32.totalorder %s30, 6
      %s37 = sphi 0, %s49
      %s38 = sphi 0, %s45
      %s39 = sphi 0, %s37
      %s40 = sphi 0, %s38
      %s41 = sphi 0, %s39
      %s42 = sphi 0, %s40
      %s52 = sphi 0, %s54
      %s55 = sphi 0, %s52
      %s56 = sphi 0, %s55
      %s72 = sphi 0, %s56
      %s80 = sphi 0, %s82
      %s83 = sphi 0, %s80
      %s84 = sphi 0, %s83
      %s100 = sphi 0, %s84
      %s104 = sphi 0, %s104
      %s106 = sphi 0, %s104
      %s107 = sphi 0, %s106
      %s121 = sphi 0, %s107
      %s125 = sphi 0, %s125
      %s127 = sphi 0, %s125
      %s128 = sphi 0, %s127
      %s142 = sphi 0, %s128
      %s146 = sphi 0, %s146
      %s148 = sphi 0, %s146
      %s149 = sphi 0, %s148
      %s163 = sphi 0, %s149
      %s167 = sphi 0, %s167
      %s169 = sphi 0, %s167
      %s170 = sphi 0, %s169
      %s184 = sphi 0, %s170
      %s188 = sphi 0, %s188
      %s190 = sphi 0, %s188
      %s191 = sphi 0, %s190
      %s205 = sphi 0, %s191
      %s209 = sphi 0, %s209
      %s211 = sphi 0, %s209
      %s212 = sphi 0, %s211
      %s226 = sphi 0, %s212
      %s230 = sphi 0, %s230
      %s232 = sphi 0, %s230
      %s233 = sphi 0, %s232
      %s247 = sphi 0, %s233
      %s251 = sphi 0, %s251
      %s253 = sphi 0, %s251
      %s254 = sphi 0, %s253
      %s268 = sphi 0, %s254
      %s272 = sphi 0, %s272
      %s274 = sphi 0, %s272
      %s275 = sphi 0, %s274
      %s289 = sphi 0, %s275
      %s293 = sphi 0, %s293
      %s295 = sphi 0, %s293
      %s296 = sphi 0, %s295
      %s310 = sphi 0, %s296
      %s314 = sphi 0, %s314
      %s316 = sphi 0, %s314
      %s317 = sphi 0, %s316
      %s331 = sphi 0, %s317
      %s335 = sphi 0, %s335
      %s337 = sphi 0, %s335
      %s338 = sphi 0, %s337
      %s352 = sphi 0, %s338
      %s356 = sphi 0, %s356
      %s358 = sphi 0, %s356
      %s359 = sphi 0, %s358
      %s373 = sphi 0, %s359
      %s381 = sphi 0, %s383
      %s384 = sphi 0, %s381
      %s385 = sphi 0, %s384
      %s401 = sphi 0, %s385
    $region4: #{tpu_custom_call.1} parent=1 // loop_header_branch
      %33 = sbr.rel (%p31) target = $region8
    $region5: #{tpu_custom_call.1} parent=1 // loop_body
      %s35 = ssub.s32 %s30, 1
      %s36 = ssub.s32 %s30, 2
      %s43 = sadd.s32 1, %s38
      %p44 = scmp.ge.s32.totalorder %s43, 2
      %s45 = scalar_select %p44, 0, %s43
      %s46 = sadd.s32 1, %s37
      %s47 = scalar_select %p44, %s46, %s37
      %p48 = scmp.ge.s32.totalorder %s47, 2
      %s49 = scalar_select %p48, 0, %s47
      %s50 = ssub.s32 %s37, %s49
      %p51 = scmp.eq.s32.totalorder %s50, 0
      %s53 = sadd.s32 %s52, 1
      %s54 = scalar_select %p51, %s52, %s53
      %p57 = pneg %p51
      %p58 = scmp.eq.s32.totalorder %s30, 3
      %p59 = por %p57, %p58
      %p60 = scmp.ne.s32.totalorder %s52, %s55
      %p61 = scmp.eq.s32.totalorder %s30, 0
      %p62 = por %p60, %p61
      %p63 = scmp.ne.s32.totalorder %s52, %s55
      %p64 = scmp.eq.s32.totalorder %s35, 3
      %p65 = por %p63, %p64
      %p66 = scmp.ne.s32.totalorder %s55, %s56
      %p67 = scmp.eq.s32.totalorder %s35, 0
      %p68 = por %p66, %p67
      %p69 = scmp.ne.s32.totalorder %s55, %s56
      %p70 = scmp.eq.s32.totalorder %s36, 3
      %p71 = por %p69, %p70
      %p73 = scmp.ne.s32.totalorder %s56, %s72
      %p74 = scmp.eq.s32.totalorder %s36, 0
      %p75 = por %p73, %p74
      %s76 = ssub.s32 %s37, %s49
      %s77 = ssub.s32 %s38, %s45
      %s78 = sor.u32 %s76, %s77
      %p79 = scmp.eq.s32.totalorder %s78, 0
      %s81 = sadd.s32 %s80, 1
      %s82 = scalar_select %p79, %s80, %s81
      %p85 = pneg %p79
      %p86 = scmp.eq.s32.totalorder %s30, 3
      %p87 = por %p85, %p86
      %p88 = scmp.ne.s32.totalorder %s80, %s83
      %p89 = scmp.eq.s32.totalorder %s30, 0
      %p90 = por %p88, %p89
      %p91 = scmp.ne.s32.totalorder %s80, %s83
      %p92 = scmp.eq.s32.totalorder %s35, 3
      %p93 = por %p91, %p92
      %p94 = scmp.ne.s32.totalorder %s83, %s84
      %p95 = scmp.eq.s32.totalorder %s35, 0
      %p96 = por %p94, %p95
      %p97 = scmp.ne.s32.totalorder %s83, %s84
      %p98 = scmp.eq.s32.totalorder %s36, 3
      %p99 = por %p97, %p98
      %p101 = scmp.ne.s32.totalorder %s84, %s100
      %p102 = scmp.eq.s32.totalorder %s36, 0
      %p103 = por %p101, %p102
      %s105 = sadd.s32 %s104, 1
      %p108 = scmp.eq.s32.totalorder %s30, 3
      %p109 = scmp.ne.s32.totalorder %s104, %s106
      %p110 = scmp.eq.s32.totalorder %s30, 0
      %p111 = por %p109, %p110
      %p112 = scmp.ne.s32.totalorder %s104, %s106
      %p113 = scmp.eq.s32.totalorder %s35, 3
      %p114 = por %p112, %p113
      %p115 = scmp.ne.s32.totalorder %s106, %s107
      %p116 = scmp.eq.s32.totalorder %s35, 0
      %p117 = por %p115, %p116
      %p118 = scmp.ne.s32.totalorder %s106, %s107
      %p119 = scmp.eq.s32.totalorder %s36, 3
      %p120 = por %p118, %p119
      %p122 = scmp.ne.s32.totalorder %s107, %s121
      %p123 = scmp.eq.s32.totalorder %s36, 0
      %p124 = por %p122, %p123
      %s126 = sadd.s32 %s125, 1
      %p129 = scmp.eq.s32.totalorder %s30, 3
      %p130 = scmp.ne.s32.totalorder %s125, %s127
      %p131 = scmp.eq.s32.totalorder %s30, 0
      %p132 = por %p130, %p131
      %p133 = scmp.ne.s32.totalorder %s125, %s127
      %p134 = scmp.eq.s32.totalorder %s35, 3
      %p135 = por %p133, %p134
      %p136 = scmp.ne.s32.totalorder %s127, %s128
      %p137 = scmp.eq.s32.totalorder %s35, 0
      %p138 = por %p136, %p137
      %p139 = scmp.ne.s32.totalorder %s127, %s128
      %p140 = scmp.eq.s32.totalorder %s36, 3
      %p141 = por %p139, %p140
      %p143 = scmp.ne.s32.totalorder %s128, %s142
      %p144 = scmp.eq.s32.totalorder %s36, 0
      %p145 = por %p143, %p144
      %s147 = sadd.s32 %s146, 1
      %p150 = scmp.eq.s32.totalorder %s30, 3
      %p151 = scmp.ne.s32.totalorder %s146, %s148
      %p152 = scmp.eq.s32.totalorder %s30, 0
      %p153 = por %p151, %p152
      %p154 = scmp.ne.s32.totalorder %s146, %s148
      %p155 = scmp.eq.s32.totalorder %s35, 3
      %p156 = por %p154, %p155
      %p157 = scmp.ne.s32.totalorder %s148, %s149
      %p158 = scmp.eq.s32.totalorder %s35, 0
      %p159 = por %p157, %p158
      %p160 = scmp.ne.s32.totalorder %s148, %s149
      %p161 = scmp.eq.s32.totalorder %s36, 3
      %p162 = por %p160, %p161
      %p164 = scmp.ne.s32.totalorder %s149, %s163
      %p165 = scmp.eq.s32.totalorder %s36, 0
      %p166 = por %p164, %p165
      %s168 = sadd.s32 %s167, 1
      %p171 = scmp.eq.s32.totalorder %s30, 3
      %p172 = scmp.ne.s32.totalorder %s167, %s169
      %p173 = scmp.eq.s32.totalorder %s30, 0
      %p174 = por %p172, %p173
      %p175 = scmp.ne.s32.totalorder %s167, %s169
      %p176 = scmp.eq.s32.totalorder %s35, 3
      %p177 = por %p175, %p176
      %p178 = scmp.ne.s32.totalorder %s169, %s170
      %p179 = scmp.eq.s32.totalorder %s35, 0
      %p180 = por %p178, %p179
      %p181 = scmp.ne.s32.totalorder %s169, %s170
      %p182 = scmp.eq.s32.totalorder %s36, 3
      %p183 = por %p181, %p182
      %p185 = scmp.ne.s32.totalorder %s170, %s184
      %p186 = scmp.eq.s32.totalorder %s36, 0
      %p187 = por %p185, %p186
      %s189 = sadd.s32 %s188, 1
      %p192 = scmp.eq.s32.totalorder %s30, 3
      %p193 = scmp.ne.s32.totalorder %s188, %s190
      %p194 = scmp.eq.s32.totalorder %s30, 0
      %p195 = por %p193, %p194
      %p196 = scmp.ne.s32.totalorder %s188, %s190
      %p197 = scmp.eq.s32.totalorder %s35, 3
      %p198 = por %p196, %p197
      %p199 = scmp.ne.s32.totalorder %s190, %s191
      %p200 = scmp.eq.s32.totalorder %s35, 0
      %p201 = por %p199, %p200
      %p202 = scmp.ne.s32.totalorder %s190, %s191
      %p203 = scmp.eq.s32.totalorder %s36, 3
      %p204 = por %p202, %p203
      %p206 = scmp.ne.s32.totalorder %s191, %s205
      %p207 = scmp.eq.s32.totalorder %s36, 0
      %p208 = por %p206, %p207
      %s210 = sadd.s32 %s209, 1
      %p213 = scmp.eq.s32.totalorder %s30, 3
      %p214 = scmp.ne.s32.totalorder %s209, %s211
      %p215 = scmp.eq.s32.totalorder %s30, 0
      %p216 = por %p214, %p215
      %p217 = scmp.ne.s32.totalorder %s209, %s211
      %p218 = scmp.eq.s32.totalorder %s35, 3
      %p219 = por %p217, %p218
      %p220 = scmp.ne.s32.totalorder %s211, %s212
      %p221 = scmp.eq.s32.totalorder %s35, 0
      %p222 = por %p220, %p221
      %p223 = scmp.ne.s32.totalorder %s211, %s212
      %p224 = scmp.eq.s32.totalorder %s36, 3
      %p225 = por %p223, %p224
      %p227 = scmp.ne.s32.totalorder %s212, %s226
      %p228 = scmp.eq.s32.totalorder %s36, 0
      %p229 = por %p227, %p228
      %s231 = sadd.s32 %s230, 1
      %p234 = scmp.eq.s32.totalorder %s30, 3
      %p235 = scmp.ne.s32.totalorder %s230, %s232
      %p236 = scmp.eq.s32.totalorder %s30, 0
      %p237 = por %p235, %p236
      %p238 = scmp.ne.s32.totalorder %s230, %s232
      %p239 = scmp.eq.s32.totalorder %s35, 3
      %p240 = por %p238, %p239
      %p241 = scmp.ne.s32.totalorder %s232, %s233
      %p242 = scmp.eq.s32.totalorder %s35, 0
      %p243 = por %p241, %p242
      %p244 = scmp.ne.s32.totalorder %s232, %s233
      %p245 = scmp.eq.s32.totalorder %s36, 3
      %p246 = por %p244, %p245
      %p248 = scmp.ne.s32.totalorder %s233, %s247
      %p249 = scmp.eq.s32.totalorder %s36, 0
      %p250 = por %p248, %p249
      %s252 = sadd.s32 %s251, 1
      %p255 = scmp.eq.s32.totalorder %s30, 3
      %p256 = scmp.ne.s32.totalorder %s251, %s253
      %p257 = scmp.eq.s32.totalorder %s30, 0
      %p258 = por %p256, %p257
      %p259 = scmp.ne.s32.totalorder %s251, %s253
      %p260 = scmp.eq.s32.totalorder %s35, 3
      %p261 = por %p259, %p260
      %p262 = scmp.ne.s32.totalorder %s253, %s254
      %p263 = scmp.eq.s32.totalorder %s35, 0
      %p264 = por %p262, %p263
      %p265 = scmp.ne.s32.totalorder %s253, %s254
      %p266 = scmp.eq.s32.totalorder %s36, 3
      %p267 = por %p265, %p266
      %p269 = scmp.ne.s32.totalorder %s254, %s268
      %p270 = scmp.eq.s32.totalorder %s36, 0
      %p271 = por %p269, %p270
      %s273 = sadd.s32 %s272, 1
      %p276 = scmp.eq.s32.totalorder %s30, 3
      %p277 = scmp.ne.s32.totalorder %s272, %s274
      %p278 = scmp.eq.s32.totalorder %s30, 0
      %p279 = por %p277, %p278
      %p280 = scmp.ne.s32.totalorder %s272, %s274
      %p281 = scmp.eq.s32.totalorder %s35, 3
      %p282 = por %p280, %p281
      %p283 = scmp.ne.s32.totalorder %s274, %s275
      %p284 = scmp.eq.s32.totalorder %s35, 0
      %p285 = por %p283, %p284
      %p286 = scmp.ne.s32.totalorder %s274, %s275
      %p287 = scmp.eq.s32.totalorder %s36, 3
      %p288 = por %p286, %p287
      %p290 = scmp.ne.s32.totalorder %s275, %s289
      %p291 = scmp.eq.s32.totalorder %s36, 0
      %p292 = por %p290, %p291
      %s294 = sadd.s32 %s293, 1
      %p297 = scmp.eq.s32.totalorder %s30, 3
      %p298 = scmp.ne.s32.totalorder %s293, %s295
      %p299 = scmp.eq.s32.totalorder %s30, 0
      %p300 = por %p298, %p299
      %p301 = scmp.ne.s32.totalorder %s293, %s295
      %p302 = scmp.eq.s32.totalorder %s35, 3
      %p303 = por %p301, %p302
      %p304 = scmp.ne.s32.totalorder %s295, %s296
      %p305 = scmp.eq.s32.totalorder %s35, 0
      %p306 = por %p304, %p305
      %p307 = scmp.ne.s32.totalorder %s295, %s296
      %p308 = scmp.eq.s32.totalorder %s36, 3
      %p309 = por %p307, %p308
      %p311 = scmp.ne.s32.totalorder %s296, %s310
      %p312 = scmp.eq.s32.totalorder %s36, 0
      %p313 = por %p311, %p312
      %s315 = sadd.s32 %s314, 1
      %p318 = scmp.eq.s32.totalorder %s30, 3
      %p319 = scmp.ne.s32.totalorder %s314, %s316
      %p320 = scmp.eq.s32.totalorder %s30, 0
      %p321 = por %p319, %p320
      %p322 = scmp.ne.s32.totalorder %s314, %s316
      %p323 = scmp.eq.s32.totalorder %s35, 3
      %p324 = por %p322, %p323
      %p325 = scmp.ne.s32.totalorder %s316, %s317
      %p326 = scmp.eq.s32.totalorder %s35, 0
      %p327 = por %p325, %p326
      %p328 = scmp.ne.s32.totalorder %s316, %s317
      %p329 = scmp.eq.s32.totalorder %s36, 3
      %p330 = por %p328, %p329
      %p332 = scmp.ne.s32.totalorder %s317, %s331
      %p333 = scmp.eq.s32.totalorder %s36, 0
      %p334 = por %p332, %p333
      %s336 = sadd.s32 %s335, 1
      %p339 = scmp.eq.s32.totalorder %s30, 3
      %p340 = scmp.ne.s32.totalorder %s335, %s337
      %p341 = scmp.eq.s32.totalorder %s30, 0
      %p342 = por %p340, %p341
      %p343 = scmp.ne.s32.totalorder %s335, %s337
      %p344 = scmp.eq.s32.totalorder %s35, 3
      %p345 = por %p343, %p344
      %p346 = scmp.ne.s32.totalorder %s337, %s338
      %p347 = scmp.eq.s32.totalorder %s35, 0
      %p348 = por %p346, %p347
      %p349 = scmp.ne.s32.totalorder %s337, %s338
      %p350 = scmp.eq.s32.totalorder %s36, 3
      %p351 = por %p349, %p350
      %p353 = scmp.ne.s32.totalorder %s338, %s352
      %p354 = scmp.eq.s32.totalorder %s36, 0
      %p355 = por %p353, %p354
      %s357 = sadd.s32 %s356, 1
      %p360 = scmp.eq.s32.totalorder %s30, 3
      %p361 = scmp.ne.s32.totalorder %s356, %s358
      %p362 = scmp.eq.s32.totalorder %s30, 0
      %p363 = por %p361, %p362
      %p364 = scmp.ne.s32.totalorder %s356, %s358
      %p365 = scmp.eq.s32.totalorder %s35, 3
      %p366 = por %p364, %p365
      %p367 = scmp.ne.s32.totalorder %s358, %s359
      %p368 = scmp.eq.s32.totalorder %s35, 0
      %p369 = por %p367, %p368
      %p370 = scmp.ne.s32.totalorder %s358, %s359
      %p371 = scmp.eq.s32.totalorder %s36, 3
      %p372 = por %p370, %p371
      %p374 = scmp.ne.s32.totalorder %s359, %s373
      %p375 = scmp.eq.s32.totalorder %s36, 0
      %p376 = por %p374, %p375
      %s377 = ssub.s32 %s37, %s49
      %s378 = ssub.s32 %s38, %s45
      %s379 = sor.u32 %s377, %s378
      %p380 = scmp.eq.s32.totalorder %s379, 0
      %s382 = sadd.s32 %s381, 1
      %s383 = scalar_select %p380, %s381, %s382
      %p386 = pneg %p380
      %p387 = scmp.eq.s32.totalorder %s30, 3
      %p388 = por %p386, %p387
      %p389 = scmp.ne.s32.totalorder %s381, %s384
      %p390 = scmp.eq.s32.totalorder %s30, 0
      %p391 = por %p389, %p390
      %p392 = scmp.ne.s32.totalorder %s381, %s384
      %p393 = scmp.eq.s32.totalorder %s35, 3
      %p394 = por %p392, %p393
      %p395 = scmp.ne.s32.totalorder %s384, %s385
      %p396 = scmp.eq.s32.totalorder %s35, 0
      %p397 = por %p395, %p396
      %p398 = scmp.ne.s32.totalorder %s384, %s385
      %p399 = scmp.eq.s32.totalorder %s36, 3
      %p400 = por %p398, %p399
      %p402 = scmp.ne.s32.totalorder %s385, %s401
      %p403 = scmp.eq.s32.totalorder %s36, 0
      %p404 = por %p402, %p403
      %p405 = scmp.le.s32.totalorder 1, %s30
      %p406 = scmp.lt.s32.totalorder %s30, 5
      %p407 = pnand %p405, %p406
      %p408 = pneg %p407
      // Predicated region
      $region9: #{tpu_custom_call.1} parent=5 // pred_check
        _
      $region10: #{tpu_custom_call.1} parent=5 // pred_check_branch
        %410 = sbr.rel (%p407) target = $region12
      $region11: #{tpu_custom_call.1} parent=5 // pred_region
        %s411 = ssub.s32 %s30, 1
        // Predicated region
        $region13: #{tpu_custom_call.1} parent=11 // pred_check
          %p412 = pneg %p117
        $region14: #{tpu_custom_call.1} parent=11 // pred_check_branch
          %414 = sbr.rel (%p412) target = $region16
        $region15: #{tpu_custom_call.1} parent=11 // pred_region
          _
        $region16: #{tpu_custom_call.1} parent=11 // pred_fallthru
          _
        // Predicated region
        $region17: #{tpu_custom_call.1} parent=11 // pred_check
          %p415 = pneg %p138
        $region18: #{tpu_custom_call.1} parent=11 // pred_check_branch
          %417 = sbr.rel (%p415) target = $region20
        $region19: #{tpu_custom_call.1} parent=11 // pred_region
          _
        $region20: #{tpu_custom_call.1} parent=11 // pred_fallthru
          _
        // Predicated region
        $region21: #{tpu_custom_call.1} parent=11 // pred_check
          %p418 = pneg %p159
        $region22: #{tpu_custom_call.1} parent=11 // pred_check_branch
          %420 = sbr.rel (%p418) target = $region24
        $region23: #{tpu_custom_call.1} parent=11 // pred_region
          %s422 = ssub.s32 256, 256
          %423 = vsyncadd [#allocation9], %s422
          %s424 = sshll.u32 [#allocation8], 4
          %s425 = int_to_ptr.vmem [resolvable:$true] %s424
          %430 = dma.hbm_to_vmem [thread:$0]  %s4, 256, %s425, [#allocation9], 64, 64, 4
        $region24: #{tpu_custom_call.1} parent=11 // pred_fallthru
          _
        // Predicated region
        $region25: #{tpu_custom_call.1} parent=11 // pred_check
          %p431 = pneg %p180
        $region26: #{tpu_custom_call.1} parent=11 // pred_check_branch
          %433 = sbr.rel (%p431) target = $region28
        $region27: #{tpu_custom_call.1} parent=11 // pred_region
          _
        $region28: #{tpu_custom_call.1} parent=11 // pred_fallthru
          _
        // Predicated region
        $region29: #{tpu_custom_call.1} parent=11 // pred_check
          %p434 = pneg %p201
        $region30: #{tpu_custom_call.1} parent=11 // pred_check_branch
          %436 = sbr.rel (%p434) target = $region32
        $region31: #{tpu_custom_call.1} parent=11 // pred_region
          %s438 = ssub.s32 256, 256
          %439 = vsyncadd [#allocation9], %s438
          %s440 = sshll.u32 [#allocation10], 4
          %s441 = int_to_ptr.vmem [resolvable:$true] %s440
          %446 = dma.hbm_to_vmem [thread:$0]  %s6, 256, %s441, [#allocation9], 64, 64, 4
        $region32: #{tpu_custom_call.1} parent=11 // pred_fallthru
          _
        // Predicated region
        $region33: #{tpu_custom_call.1} parent=11 // pred_check
          %p447 = pneg %p222
        $region34: #{tpu_custom_call.1} parent=11 // pred_check_branch
          %449 = sbr.rel (%p447) target = $region36
        $region35: #{tpu_custom_call.1} parent=11 // pred_region
          %s451 = ssub.s32 16, 16
          %452 = vsyncadd [#allocation12], %s451
          %s454 = sshll.u32 [#allocation11], 4
          %s455 = int_to_ptr.vmem [resolvable:$true] %s454
          %457 = dma.hbm_to_vmem [thread:$0]  %s7, 16, %s455, [#allocation12]
        $region36: #{tpu_custom_call.1} parent=11 // pred_fallthru
          _
        // Predicated region
        $region37: #{tpu_custom_call.1} parent=11 // pred_check
          %p458 = pneg %p243
        $region38: #{tpu_custom_call.1} parent=11 // pred_check_branch
          %460 = sbr.rel (%p458) target = $region40
        $region39: #{tpu_custom_call.1} parent=11 // pred_region
          %s462 = ssub.s32 256, 256
          %463 = vsyncadd [#allocation12], %s462
          %s464 = sshll.u32 [#allocation13], 4
          %s465 = int_to_ptr.vmem [resolvable:$true] %s464
          %470 = dma.hbm_to_vmem [thread:$0]  %s8, 256, %s465, [#allocation12], 64, 64, 4
        $region40: #{tpu_custom_call.1} parent=11 // pred_fallthru
          _
        // Predicated region
        $region41: #{tpu_custom_call.1} parent=11 // pred_check
          %p471 = pneg %p264
        $region42: #{tpu_custom_call.1} parent=11 // pred_check_branch
          %473 = sbr.rel (%p471) target = $region44
        $region43: #{tpu_custom_call.1} parent=11 // pred_region
          %s475 = ssub.s32 16, 16
          %476 = vsyncadd [#allocation15], %s475
          %s478 = sshll.u32 [#allocation14], 4
          %s479 = int_to_ptr.vmem [resolvable:$true] %s478
          %481 = dma.hbm_to_vmem [thread:$0]  %s9, 16, %s479, [#allocation15]
        $region44: #{tpu_custom_call.1} parent=11 // pred_fallthru
          _
        // Predicated region
        $region45: #{tpu_custom_call.1} parent=11 // pred_check
          %p482 = pneg %p285
        $region46: #{tpu_custom_call.1} parent=11 // pred_check_branch
          %484 = sbr.rel (%p482) target = $region48
        $region47: #{tpu_custom_call.1} parent=11 // pred_region
          _
        $region48: #{tpu_custom_call.1} parent=11 // pred_fallthru
          _
        // Predicated region
        $region49: #{tpu_custom_call.1} parent=11 // pred_check
          %p485 = pneg %p306
        $region50: #{tpu_custom_call.1} parent=11 // pred_check_branch
          %487 = sbr.rel (%p485) target = $region52
        $region51: #{tpu_custom_call.1} parent=11 // pred_region
          %s489 = ssub.s32 256, 256
          %490 = vsyncadd [#allocation15], %s489
          %s491 = sshll.u32 [#allocation16], 4
          %s492 = int_to_ptr.vmem [resolvable:$true] %s491
          %497 = dma.hbm_to_vmem [thread:$0]  %s11, 256, %s492, [#allocation15], 64, 64, 4
        $region52: #{tpu_custom_call.1} parent=11 // pred_fallthru
          _
        // Predicated region
        $region53: #{tpu_custom_call.1} parent=11 // pred_check
          %p498 = pneg %p327
        $region54: #{tpu_custom_call.1} parent=11 // pred_check_branch
          %500 = sbr.rel (%p498) target = $region56
        $region55: #{tpu_custom_call.1} parent=11 // pred_region
          _
        $region56: #{tpu_custom_call.1} parent=11 // pred_fallthru
          _
        // Predicated region
        $region57: #{tpu_custom_call.1} parent=11 // pred_check
          %p501 = pneg %p348
        $region58: #{tpu_custom_call.1} parent=11 // pred_check_branch
          %503 = sbr.rel (%p501) target = $region60
        $region59: #{tpu_custom_call.1} parent=11 // pred_region
          _
        $region60: #{tpu_custom_call.1} parent=11 // pred_fallthru
          _
        // Predicated region
        $region61: #{tpu_custom_call.1} parent=11 // pred_check
          %p504 = pneg %p369
        $region62: #{tpu_custom_call.1} parent=11 // pred_check_branch
          %506 = sbr.rel (%p504) target = $region64
        $region63: #{tpu_custom_call.1} parent=11 // pred_region
          _
        $region64: #{tpu_custom_call.1} parent=11 // pred_fallthru
          _
      $region12: #{tpu_custom_call.1} parent=5 // pred_fallthru
        _
      %p507 = scmp.lt.s32.totalorder %s30, 4
      // Predicated region
      $region65: #{tpu_custom_call.1} parent=5 // pred_check
        %p508 = pneg %p507
      $region66: #{tpu_custom_call.1} parent=5 // pred_check_branch
        %510 = sbr.rel (%p508) target = $region68
      $region67: #{tpu_custom_call.1} parent=5 // pred_region
        // Predicated region
        $region69: #{tpu_custom_call.1} parent=67 // pred_check
          %p511 = pneg %p62
        $region70: #{tpu_custom_call.1} parent=67 // pred_check_branch
          %513 = sbr.rel (%p511) target = $region72
        $region71: #{tpu_custom_call.1} parent=67 // pred_region
          %p514 = scmp.lt.s32.totalorder %s37, 1
          %s515 = scalar_select %p514, %s37, 1
          %s516 = smul.addr %s515, 4
          %s517 = smul.addr %s516, 4
          %s518 = scalar_lea.vmem %s0, %s517
        $region72: #{tpu_custom_call.1} parent=67 // pred_fallthru
          _
        // Predicated region
        $region73: #{tpu_custom_call.1} parent=67 // pred_check
          %p519 = pneg %p90
        $region74: #{tpu_custom_call.1} parent=67 // pred_check_branch
          %521 = sbr.rel (%p519) target = $region76
        $region75: #{tpu_custom_call.1} parent=67 // pred_region
          %s522 = sand.u32 %s80, 1
          %s523 = scalar_lea.sflag [#allocation6], %s522
          %s524 = sand.u32 %s80, 1
          %s525 = smul.addr %s524, 8
          %s526 = scalar_lea.vmem [#allocation5], %s525
          %s527 = smul.u32 2, %s38
          %s529 = ssub.s32 128, 128
          %530 = vsyncadd %s523, %s529
          %s531 = smul.addr %s37, 4
          %s532 = sadd.s32 %s527, %s531
          %s533 = smul.addr %s532, 64
          %s534 = scalar_lea.hbm %s1, %s533
          %s535 = sshll.u32 %s526, 4
          %s536 = int_to_ptr.vmem [resolvable:$true] %s535
          %541 = dma.hbm_to_vmem [thread:$0]  %s534, 128, %s536, %s523, 64, 64, 4
        $region76: #{tpu_custom_call.1} parent=67 // pred_fallthru
          _
      $region68: #{tpu_custom_call.1} parent=5 // pred_fallthru
        _
      %p542 = scmp.le.s32.totalorder 1, %s30
      %p543 = scmp.lt.s32.totalorder %s30, 5
      %p544 = pnand %p542, %p543
      %p545 = pneg %p544
      // Predicated region
      $region77: #{tpu_custom_call.1} parent=5 // pred_check
        _
      $region78: #{tpu_custom_call.1} parent=5 // pred_check_branch
        %547 = sbr.rel (%p544) target = $region80
      $region79: #{tpu_custom_call.1} parent=5 // pred_region
        %s548 = ssub.s32 %s30, 1
        %s549 = sand.u32 %s83, 1
        %s550 = scalar_lea.sflag [#allocation6], %s549
        %s551 = sand.u32 %s83, 1
        %s552 = smul.addr %s551, 8
        %s553 = scalar_lea.vmem [#allocation5], %s552
        // Predicated region
        $region81: #{tpu_custom_call.1} parent=79 // pred_check
          %p554 = pneg %p96
        $region82: #{tpu_custom_call.1} parent=79 // pred_check_branch
          %556 = sbr.rel (%p554) target = $region84
        $region83: #{tpu_custom_call.1} parent=79 // pred_region
          %557 = dma.done %s550, 128
        $region84: #{tpu_custom_call.1} parent=79 // pred_fallthru
          _
        // Predicated region
        $region85: #{tpu_custom_call.1} parent=79 // pred_check
          %p558 = pneg %p159
        $region86: #{tpu_custom_call.1} parent=79 // pred_check_branch
          %560 = sbr.rel (%p558) target = $region88
        $region87: #{tpu_custom_call.1} parent=79 // pred_region
          %561 = dma.done [#allocation9], 256
        $region88: #{tpu_custom_call.1} parent=79 // pred_fallthru
          _
        // Predicated region
        $region89: #{tpu_custom_call.1} parent=79 // pred_check
          %p562 = pneg %p201
        $region90: #{tpu_custom_call.1} parent=79 // pred_check_branch
          %564 = sbr.rel (%p562) target = $region92
        $region91: #{tpu_custom_call.1} parent=79 // pred_region
          %565 = dma.done [#allocation9], 256
        $region92: #{tpu_custom_call.1} parent=79 // pred_fallthru
          _
        // Predicated region
        $region93: #{tpu_custom_call.1} parent=79 // pred_check
          %p566 = pneg %p222
        $region94: #{tpu_custom_call.1} parent=79 // pred_check_branch
          %568 = sbr.rel (%p566) target = $region96
        $region95: #{tpu_custom_call.1} parent=79 // pred_region
          %569 = dma.done [#allocation12], 16
        $region96: #{tpu_custom_call.1} parent=79 // pred_fallthru
          _
        // Predicated region
        $region97: #{tpu_custom_call.1} parent=79 // pred_check
          %p570 = pneg %p243
        $region98: #{tpu_custom_call.1} parent=79 // pred_check_branch
          %572 = sbr.rel (%p570) target = $region100
        $region99: #{tpu_custom_call.1} parent=79 // pred_region
          %573 = dma.done [#allocation12], 256
        $region100: #{tpu_custom_call.1} parent=79 // pred_fallthru
          _
        // Predicated region
        $region101: #{tpu_custom_call.1} parent=79 // pred_check
          %p574 = pneg %p264
        $region102: #{tpu_custom_call.1} parent=79 // pred_check_branch
          %576 = sbr.rel (%p574) target = $region104
        $region103: #{tpu_custom_call.1} parent=79 // pred_region
          %577 = dma.done [#allocation15], 16
        $region104: #{tpu_custom_call.1} parent=79 // pred_fallthru
          _
        // Predicated region
        $region105: #{tpu_custom_call.1} parent=79 // pred_check
          %p578 = pneg %p306
        $region106: #{tpu_custom_call.1} parent=79 // pred_check_branch
          %580 = sbr.rel (%p578) target = $region108
        $region107: #{tpu_custom_call.1} parent=79 // pred_region
          %581 = dma.done [#allocation15], 256
        $region108: #{tpu_custom_call.1} parent=79 // pred_fallthru
          _
        %p582 = scmp.lt.s32.totalorder %s39, 1
        %s583 = scalar_select %p582, %s39, 1
        %s584 = smul.addr %s583, 4
        %s585 = smul.addr %s584, 4
        %s586 = scalar_lea.vmem %s0, %s585
        %p587 = pneg %p68
        %p588 = pneg %p65
        %s589 = sand.u32 %s83, 1
        %s590 = scalar_lea.sflag [#allocation6], %s589
        %s591 = sand.u32 %s83, 1
        %s592 = smul.addr %s591, 8
        %s593 = scalar_lea.vmem [#allocation5], %s592
        %p594 = pneg %p96
        %p595 = pneg %p93
        %p596 = pneg %p117
        %p597 = pneg %p114
        %p598 = pneg %p138
        %p599 = pneg %p135
        %p600 = pneg %p159
        %p601 = pneg %p156
        %p602 = pneg %p180
        %p603 = pneg %p177
        %p604 = pneg %p201
        %p605 = pneg %p198
        %p606 = pneg %p222
        %p607 = pneg %p219
        %p608 = pneg %p243
        %p609 = pneg %p240
        %p610 = pneg %p264
        %p611 = pneg %p261
        %p612 = pneg %p285
        %p613 = pneg %p282
        %p614 = pneg %p306
        %p615 = pneg %p303
        %p616 = pneg %p327
        %p617 = pneg %p324
        %p618 = pneg %p348
        %p619 = pneg %p345
        %p620 = pneg %p369
        %p621 = pneg %p366
        %p622 = pneg %p397
        %p623 = pneg %p394
        %s624 = sand.u32 %s384, 1
        %s625 = scalar_lea.sflag [#allocation7], %s624
        %s626 = sand.u32 %s384, 1
        %s627 = smul.addr %s626, 16
        %s628 = scalar_lea.vmem [#allocation17], %s627
        %p629 = scmp.lt.s32.totalorder %s39, 1
        %s630 = scalar_select %p629, %s39, 1
        %s631 = smul.addr %s630, 4
        %s632 = smul.addr %s631, 4
        %s633 = scalar_lea.vmem %s0, %s632
        %s634 = smul.u32 2, %s40
        %s635 = smul.u32 2, %s40
        %p637 = scmp.eq.s32.totalorder %s40, 0
        // Predicated region
        $region109: #{tpu_custom_call.1} parent=79 // pred_check
          %p638 = pneg %p637
        $region110: #{tpu_custom_call.1} parent=79 // pred_check_branch
          %640 = sbr.rel (%p638) target = $region112
        $region111: #{tpu_custom_call.1} parent=79 // pred_region
          %v641 = vld [vmem:[%s633] sm:$0xf]
          %v642 = vld [vmem:[%s633 + $0x4] sm:$0xf]
          %v643 = vld [vmem:[%s633 + $0x8] sm:$0xf]
          %v644 = vld [vmem:[%s633 + $0xc] sm:$0xf]
          %v645 = vld [vmem:[%s2] sm:$0xf]
          %v646 = vld [vmem:[%s2 + $0x4] sm:$0xf]
          %v647 = vld [vmem:[%s2 + $0x8] sm:$0xf]
          %v648 = vld [vmem:[%s2 + $0xc] sm:$0xf]
          %v649 = vld [vmem:[%s3] sm:$0x1]
          %v651 = vlaneseq
          %v652 = vshrl.u32 %v651, 7
          %v653 = vsub.s32 0, %v652
          %v654 = vrot.slane %v649, %v653
          %v660 = vunpack.c.l.b16 %v641
          %v661 = vunpack.c.l.b16 %v642
          %v662 = vunpack.c.l.b16 %v643
          %v663 = vunpack.c.l.b16 %v644
          %v664 = vpack.c.b16 %v661, %v660
          %v665 = vpack.c.b16 %v663, %v662
          %v670 = vunpack.c.l.b16 %v645
          %v671 = vunpack.c.l.b16 %v646
          %v672 = vunpack.c.l.b16 %v647
          %v673 = vunpack.c.l.b16 %v648
          %v674 = vpack.c.b16 %v671, %v670
          %v675 = vpack.c.b16 %v673, %v672
          %vm678 = vcmask 261120
          %v680 = vsel %vm678, %v664, 0
          %v683 = vsel %vm678, %v665, 0
          %685 = vmatprep.subr.bf16.mxu0 0
          %686 = vmatpush1.bf16.msra.mxu0 %v674
          %687 = vmatprep.subr.bf16.mxu0 0
          %688 = vmatpush1.bf16.msra.mxu0 %v675
          %689 = vmatprep.subr.bf16.mxu0 0
          %690 = vmatpush1.bf16.msra.mxu0 0
          %691 = vmatprep.subr.bf16.mxu0 0
          %692 = vmatpush1.bf16.msra.mxu0 0
          %693 = vmatprep.subr.bf16.mxu0 0
          %694 = vmatpush1.bf16.msra.mxu0 0
          %695 = vmatprep.subr.bf16.mxu0 0
          %696 = vmatpush1.bf16.msra.mxu0 0
          %697 = vmatprep.subr.bf16.mxu0 0
          %698 = vmatpush1.bf16.msra.mxu0 0
          %699 = vmatprep.subr.bf16.mxu0 0
          %700 = vmatpush1.bf16.msra.mxu0 0
          %701 = vmatprep.subr.bf16.mxu0 0
          %702 = vmatpush1.bf16.msra.mxu0 0
          %703 = vmatprep.subr.bf16.mxu0 0
          %704 = vmatpush1.bf16.msra.mxu0 0
          %705 = vmatprep.subr.bf16.mxu0 0
          %706 = vmatpush1.bf16.msra.mxu0 0
          %707 = vmatprep.subr.bf16.mxu0 0
          %708 = vmatpush1.bf16.msra.mxu0 0
          %709 = vmatprep.subr.bf16.mxu0 0
          %710 = vmatpush1.bf16.msra.mxu0 0
          %711 = vmatprep.subr.bf16.mxu0 0
          %712 = vmatpush1.bf16.msra.mxu0 0
          %713 = vmatprep.subr.bf16.mxu0 0
          %714 = vmatpush1.bf16.msra.mxu0 0
          %715 = vmatprep.subr.bf16.mxu0 0
          %716 = vmatpush1.bf16.msra.mxu0 0
          %717 = vmatprep.mubr.bf16.mxu0 0
          %718 = vmatmul.mubr.bf16.gmra.mrb[0].mxu0 %v680
          %v719 = vpop.f32.mrb[0].mxu0
          %v720 = vadd.f32 %v654, %v719
          %v721 = vpop.f32.mrb[0].mxu0
          %v722 = vpop.f32.mrb[0].mxu0
          %v723 = vadd.f32 %v654, %v722
          %v724 = vpop.f32.mrb[0].mxu0
          %725 = vmatprep.mubr.bf16.mxu0 0
          %726 = vmatmul.mubr.bf16.gmra.mrb[0].mxu0 %v683
          %v727 = vpop.f32.mrb[0].mxu0
          %v728 = vadd.f32 %v654, %v727
          %v729 = vpop.f32.mrb[0].mxu0
          %v730 = vpop.f32.mrb[0].mxu0
          %v731 = vadd.f32 %v654, %v730
          %v732 = vpop.f32.mrb[0].mxu0
          %733 = vdwg.mxu0
          %v734 = vld [vmem:[#allocation8] sm:$0xf]
          %v735 = vld [vmem:[#allocation8 + $0x4] sm:$0xf]
          %v736 = vld [vmem:[#allocation8 + $0x8] sm:$0xf]
          %v737 = vld [vmem:[#allocation8 + $0xc] sm:$0xf]
          %v738 = vld [vmem:[%s5] sm:$0x1]
          %v740 = vlaneseq
          %v741 = vshrl.u32 %v740, 7
          %v742 = vsub.s32 0, %v741
          %v743 = vrot.slane %v738, %v742
          %v749 = vunpack.c.l.b16 %v734
          %v750 = vunpack.c.l.b16 %v735
          %v751 = vunpack.c.l.b16 %v736
          %v752 = vunpack.c.l.b16 %v737
          %v753 = vpack.c.b16 %v750, %v749
          %v754 = vpack.c.b16 %v752, %v751
          %757 = vmatprep.subr.bf16.mxu0 0
          %758 = vmatpush1.bf16.msra.mxu0 %v753
          %759 = vmatprep.subr.bf16.mxu0 0
          %760 = vmatpush1.bf16.msra.mxu0 %v754
          %761 = vmatprep.subr.bf16.mxu0 0
          %762 = vmatpush1.bf16.msra.mxu0 0
          %763 = vmatprep.subr.bf16.mxu0 0
          %764 = vmatpush1.bf16.msra.mxu0 0
          %765 = vmatprep.subr.bf16.mxu0 0
          %766 = vmatpush1.bf16.msra.mxu0 0
          %767 = vmatprep.subr.bf16.mxu0 0
          %768 = vmatpush1.bf16.msra.mxu0 0
          %769 = vmatprep.subr.bf16.mxu0 0
          %770 = vmatpush1.bf16.msra.mxu0 0
          %771 = vmatprep.subr.bf16.mxu0 0
          %772 = vmatpush1.bf16.msra.mxu0 0
          %773 = vmatprep.subr.bf16.mxu0 0
          %774 = vmatpush1.bf16.msra.mxu0 0
          %775 = vmatprep.subr.bf16.mxu0 0
          %776 = vmatpush1.bf16.msra.mxu0 0
          %777 = vmatprep.subr.bf16.mxu0 0
          %778 = vmatpush1.bf16.msra.mxu0 0
          %779 = vmatprep.subr.bf16.mxu0 0
          %780 = vmatpush1.bf16.msra.mxu0 0
          %781 = vmatprep.subr.bf16.mxu0 0
          %782 = vmatpush1.bf16.msra.mxu0 0
          %783 = vmatprep.subr.bf16.mxu0 0
          %784 = vmatpush1.bf16.msra.mxu0 0
          %785 = vmatprep.subr.bf16.mxu0 0
          %786 = vmatpush1.bf16.msra.mxu0 0
          %787 = vmatprep.subr.bf16.mxu0 0
          %788 = vmatpush1.bf16.msra.mxu0 0
          %789 = vmatprep.mubr.bf16.mxu0 0
          %790 = vmatmul.mubr.bf16.gmra.mrb[0].mxu0 %v680
          %v791 = vpop.f32.mrb[0].mxu0
          %v792 = vadd.f32 %v743, %v791
          %v793 = vpop.f32.mrb[0].mxu0
          %v794 = vpop.f32.mrb[0].mxu0
          %v795 = vadd.f32 %v743, %v794
          %v796 = vpop.f32.mrb[0].mxu0
          %797 = vmatprep.mubr.bf16.mxu0 0
          %798 = vmatmul.mubr.bf16.gmra.mrb[0].mxu0 %v683
          %v799 = vpop.f32.mrb[0].mxu0
          %v800 = vadd.f32 %v743, %v799
          %v801 = vpop.f32.mrb[0].mxu0
          %v802 = vpop.f32.mrb[0].mxu0
          %v803 = vadd.f32 %v743, %v802
          %v804 = vpop.f32.mrb[0].mxu0
          %805 = vdwg.mxu0
          %v806 = vpack.c.bf16 %v723, %v720
          %v807 = vpack.c.bf16 %v731, %v728
          %808 = vst.msk [vmem:[#allocation2] sm:$0xff] %vm678, %v806
          %809 = vst.msk [vmem:[#allocation2 + $0x8] sm:$0xff] %vm678, %v807
          %v810 = vpack.c.bf16 %v795, %v792
          %v811 = vpack.c.bf16 %v803, %v800
          %812 = vst.msk [vmem:[#allocation3] sm:$0xff] %vm678, %v810
          %813 = vst.msk [vmem:[#allocation3 + $0x8] sm:$0xff] %vm678, %v811
        $region112: #{tpu_custom_call.1} parent=79 // pred_fallthru
          _
        %v814 = vld [vmem:[%s553] sm:$0xf]
        %v815 = vld [vmem:[%s553 + $0x4] sm:$0xf]
        %v816 = vld [vmem:[#allocation10] sm:$0xf]
        %v817 = vld [vmem:[#allocation10 + $0x4] sm:$0xf]
        %v818 = vld [vmem:[#allocation10 + $0x8] sm:$0xf]
        %v819 = vld [vmem:[#allocation10 + $0xc] sm:$0xf]
        %v820 = vld [vmem:[#allocation11] sm:$0x1]
        %v822 = vlaneseq
        %v823 = vshrl.u32 %v822, 7
        %v824 = vsub.s32 0, %v823
        %v825 = vrot.slane %v820, %v824
        %v829 = vunpack.c.l.b16 %v814
        %v830 = vunpack.c.l.b16 %v815
        %v831 = vpack.c.b16 %v830, %v829
        %v836 = vunpack.c.l.b16 %v816
        %v837 = vunpack.c.l.b16 %v817
        %v838 = vunpack.c.l.b16 %v818
        %v839 = vunpack.c.l.b16 %v819
        %v840 = vpack.c.b16 %v837, %v836
        %v841 = vpack.c.b16 %v839, %v838
        %vm844 = vcmask 261120
        %v846 = vsel %vm844, %v831, 0
        %848 = vmatprep.subr.bf16.mxu0 0
        %849 = vmatpush1.bf16.msra.mxu0 %v840
        %850 = vmatprep.subr.bf16.mxu0 0
        %851 = vmatpush1.bf16.msra.mxu0 %v841
        %852 = vmatprep.subr.bf16.mxu0 0
        %853 = vmatpush1.bf16.msra.mxu0 0
        %854 = vmatprep.subr.bf16.mxu0 0
        %855 = vmatpush1.bf16.msra.mxu0 0
        %856 = vmatprep.subr.bf16.mxu0 0
        %857 = vmatpush1.bf16.msra.mxu0 0
        %858 = vmatprep.subr.bf16.mxu0 0
        %859 = vmatpush1.bf16.msra.mxu0 0
        %860 = vmatprep.subr.bf16.mxu0 0
        %861 = vmatpush1.bf16.msra.mxu0 0
        %862 = vmatprep.subr.bf16.mxu0 0
        %863 = vmatpush1.bf16.msra.mxu0 0
        %864 = vmatprep.subr.bf16.mxu0 0
        %865 = vmatpush1.bf16.msra.mxu0 0
        %866 = vmatprep.subr.bf16.mxu0 0
        %867 = vmatpush1.bf16.msra.mxu0 0
        %868 = vmatprep.subr.bf16.mxu0 0
        %869 = vmatpush1.bf16.msra.mxu0 0
        %870 = vmatprep.subr.bf16.mxu0 0
        %871 = vmatpush1.bf16.msra.mxu0 0
        %872 = vmatprep.subr.bf16.mxu0 0
        %873 = vmatpush1.bf16.msra.mxu0 0
        %874 = vmatprep.subr.bf16.mxu0 0
        %875 = vmatpush1.bf16.msra.mxu0 0
        %876 = vmatprep.subr.bf16.mxu0 0
        %877 = vmatpush1.bf16.msra.mxu0 0
        %878 = vmatprep.subr.bf16.mxu0 0
        %879 = vmatpush1.bf16.msra.mxu0 0
        %880 = vmatprep.mubr.bf16.mxu0 0
        %881 = vmatmul.mubr.bf16.gmra.mrb[0].mxu0 %v846
        %v882 = vpop.f32.mrb[0].mxu0
        %v883 = vadd.f32 %v825, %v882
        %v884 = vpop.f32.mrb[0].mxu0
        %v885 = vpop.f32.mrb[0].mxu0
        %v886 = vadd.f32 %v825, %v885
        %v887 = vpop.f32.mrb[0].mxu0
        %888 = vdwg.mxu0
        %v889 = vpack.c.bf16 %v886, %v883
        %v890 = vld [vmem:[#allocation2] sm:$0xff]
        %v891 = vld [vmem:[#allocation2 + $0x8] sm:$0xff]
        %v892 = vld [vmem:[#allocation3] sm:$0xff]
        %v893 = vld [vmem:[#allocation3 + $0x8] sm:$0xff]
        %vm894 = vcmask 64512
        %v896 = vsel %vm894, %v889, 0
        %v899 = vsel %vm894, %v890, 0
        %v902 = vsel %vm894, %v891, 0
        %904 = vmatprep.subr.bf16.mxu0 0
        %905 = vmatpush1.bf16.xpose.msra.mxu0 %v899
        %906 = vmatprep.subr.bf16.mxu0 0
        %907 = vmatpush1.bf16.xpose.msra.mxu0 %v902
        %908 = vmatprep.subr.bf16.mxu0 0
        %909 = vmatpush1.bf16.xpose.msra.mxu0 0
        %910 = vmatprep.subr.bf16.mxu0 0
        %911 = vmatpush1.bf16.xpose.msra.mxu0 0
        %912 = vmatprep.subr.bf16.mxu0 0
        %913 = vmatpush1.bf16.xpose.msra.mxu0 0
        %914 = vmatprep.subr.bf16.mxu0 0
        %915 = vmatpush1.bf16.xpose.msra.mxu0 0
        %916 = vmatprep.subr.bf16.mxu0 0
        %917 = vmatpush1.bf16.xpose.msra.mxu0 0
        %918 = vmatprep.subr.bf16.mxu0 0
        %919 = vmatpush1.bf16.xpose.msra.mxu0 0
        %920 = vmatprep.subr.bf16.mxu0 0
        %921 = vmatpush1.bf16.xpose.msra.mxu0 0
        %922 = vmatprep.subr.bf16.mxu0 0
        %923 = vmatpush1.bf16.xpose.msra.mxu0 0
        %924 = vmatprep.subr.bf16.mxu0 0
        %925 = vmatpush1.bf16.xpose.msra.mxu0 0
        %926 = vmatprep.subr.bf16.mxu0 0
        %927 = vmatpush1.bf16.xpose.msra.mxu0 0
        %928 = vmatprep.subr.bf16.mxu0 0
        %929 = vmatpush1.bf16.xpose.msra.mxu0 0
        %930 = vmatprep.subr.bf16.mxu0 0
        %931 = vmatpush1.bf16.xpose.msra.mxu0 0
        %932 = vmatprep.subr.bf16.mxu0 0
        %933 = vmatpush1.bf16.xpose.msra.mxu0 0
        %934 = vmatprep.subr.bf16.mxu0 0
        %935 = vmatpush1.bf16.xpose.msra.mxu0 0
        %936 = vmatprep.mubr.bf16.mxu0 0
        %937 = vmatmul.mubr.bf16.gmra.mrb[0].mxu0 %v896
        %v938 = vpop.f32.mrb[0].mxu0
        %v939 = vadd.f32 0.0, %v938
        %v940 = vpop.f32.mrb[0].mxu0
        %v941 = vpop.f32.mrb[0].mxu0
        %v942 = vadd.f32 0.0, %v941
        %v943 = vpop.f32.mrb[0].mxu0
        %944 = vdwg.mxu0
        %v945 = vsel %vm844, %v939, -inf
        %946 = vmax.xlane.f32.xlu0 %v945
        %v947 = vpop.xlane.xlu0 %946
        %v948 = vsel %vm844, %v942, -inf
        %949 = vmax.xlane.f32.xlu0 %v948
        %v950 = vpop.xlane.xlu0 %949
        %v951 = vsub.f32 %v939, %v947
        %v952 = vsub.f32 %v942, %v950
        %v953 = vpack.c.bf16 %v952, %v951
        %v955 = vmul.bf16 %v953, 1069105081
        %v956 = vpow.bf16.pop %v955
        %v957 = vunpack.c.l.bf16 %v956
        %v958 = vunpack.c.h.bf16 %v956
        %v959 = vsel %vm844, %v957, 0.0
        %960 = vadd.xlane.f32.xlu0 %v959
        %v961 = vpop.xlane.xlu0 %960
        %v962 = vsel %vm844, %v958, 0.0
        %963 = vadd.xlane.f32.xlu0 %v962
        %v964 = vpop.xlane.xlu0 %963
        %v966 = vsel %vm844, %v956, 0
        %968 = vmatprep.subr.bf16.mxu0 0
        %969 = vmatpush1.bf16.msra.mxu0 %v892
        %970 = vmatprep.subr.bf16.mxu0 0
        %971 = vmatpush1.bf16.msra.mxu0 %v893
        %972 = vmatprep.subr.bf16.mxu0 0
        %973 = vmatpush1.bf16.msra.mxu0 0
        %974 = vmatprep.subr.bf16.mxu0 0
        %975 = vmatpush1.bf16.msra.mxu0 0
        %976 = vmatprep.subr.bf16.mxu0 0
        %977 = vmatpush1.bf16.msra.mxu0 0
        %978 = vmatprep.subr.bf16.mxu0 0
        %979 = vmatpush1.bf16.msra.mxu0 0
        %980 = vmatprep.subr.bf16.mxu0 0
        %981 = vmatpush1.bf16.msra.mxu0 0
        %982 = vmatprep.subr.bf16.mxu0 0
        %983 = vmatpush1.bf16.msra.mxu0 0
        %984 = vmatprep.subr.bf16.mxu0 0
        %985 = vmatpush1.bf16.msra.mxu0 0
        %986 = vmatprep.subr.bf16.mxu0 0
        %987 = vmatpush1.bf16.msra.mxu0 0
        %988 = vmatprep.subr.bf16.mxu0 0
        %989 = vmatpush1.bf16.msra.mxu0 0
        %990 = vmatprep.subr.bf16.mxu0 0
        %991 = vmatpush1.bf16.msra.mxu0 0
        %992 = vmatprep.subr.bf16.mxu0 0
        %993 = vmatpush1.bf16.msra.mxu0 0
        %994 = vmatprep.subr.bf16.mxu0 0
        %995 = vmatpush1.bf16.msra.mxu0 0
        %996 = vmatprep.subr.bf16.mxu0 0
        %997 = vmatpush1.bf16.msra.mxu0 0
        %998 = vmatprep.subr.bf16.mxu0 0
        %999 = vmatpush1.bf16.msra.mxu0 0
        %1000 = vmatprep.mubr.bf16.mxu0 0
        %1001 = vmatmul.mubr.bf16.gmra.mrb[0].mxu0 %v966
        %v1002 = vpop.f32.mrb[0].mxu0
        %v1003 = vadd.f32 0.0, %v1002
        %v1004 = vpop.f32.mrb[0].mxu0
        %v1005 = vpop.f32.mrb[0].mxu0
        %v1006 = vadd.f32 0.0, %v1005
        %v1007 = vpop.f32.mrb[0].mxu0
        %1008 = vdwg.mxu0
        %v1009 = vrcp.pop %v961
        %v1010 = vrcp.pop %v964
        %v1011 = vmul.f32 %v1003, %v1009
        %v1012 = vmul.f32 %v1006, %v1010
        %v1013 = vpack.c.bf16 %v1012, %v1011
        %1014 = vst.msk [vmem:[#allocation4] sm:$0xff] %vm894, %v1013
        %v1015 = vld [vmem:[#allocation2] sm:$0xff]
        %v1016 = vld [vmem:[#allocation2 + $0x8] sm:$0xff]
        %v1017 = vld [vmem:[#allocation3] sm:$0xff]
        %v1018 = vld [vmem:[#allocation3 + $0x8] sm:$0xff]
        %1020 = vrot.lane.b32.xlu0 %v889, 120
        %v1021 = vpop.permute.xlu0 %1020
        %1024 = vrot.lane.b32.xlu0 %v1015, 120
        %v1025 = vpop.permute.xlu0 %1024
        %1026 = vrot.lane.b32.xlu0 %v1016, 120
        %v1027 = vpop.permute.xlu0 %1026
        %v1029 = vsel %vm894, %v1021, 0
        %v1032 = vsel %vm894, %v1025, 0
        %v1035 = vsel %vm894, %v1027, 0
        %1037 = vmatprep.subr.bf16.mxu0 0
        %1038 = vmatpush1.bf16.xpose.msra.mxu0 %v1032
        %1039 = vmatprep.subr.bf16.mxu0 0
        %1040 = vmatpush1.bf16.xpose.msra.mxu0 %v1035
        %1041 = vmatprep.subr.bf16.mxu0 0
        %1042 = vmatpush1.bf16.xpose.msra.mxu0 0
        %1043 = vmatprep.subr.bf16.mxu0 0
        %1044 = vmatpush1.bf16.xpose.msra.mxu0 0
        %1045 = vmatprep.subr.bf16.mxu0 0
        %1046 = vmatpush1.bf16.xpose.msra.mxu0 0
        %1047 = vmatprep.subr.bf16.mxu0 0
        %1048 = vmatpush1.bf16.xpose.msra.mxu0 0
        %1049 = vmatprep.subr.bf16.mxu0 0
        %1050 = vmatpush1.bf16.xpose.msra.mxu0 0
        %1051 = vmatprep.subr.bf16.mxu0 0
        %1052 = vmatpush1.bf16.xpose.msra.mxu0 0
        %1053 = vmatprep.subr.bf16.mxu0 0
        %1054 = vmatpush1.bf16.xpose.msra.mxu0 0
        %1055 = vmatprep.subr.bf16.mxu0 0
        %1056 = vmatpush1.bf16.xpose.msra.mxu0 0
        %1057 = vmatprep.subr.bf16.mxu0 0
        %1058 = vmatpush1.bf16.xpose.msra.mxu0 0
        %1059 = vmatprep.subr.bf16.mxu0 0
        %1060 = vmatpush1.bf16.xpose.msra.mxu0 0
        %1061 = vmatprep.subr.bf16.mxu0 0
        %1062 = vmatpush1.bf16.xpose.msra.mxu0 0
        %1063 = vmatprep.subr.bf16.mxu0 0
        %1064 = vmatpush1.bf16.xpose.msra.mxu0 0
        %1065 = vmatprep.subr.bf16.mxu0 0
        %1066 = vmatpush1.bf16.xpose.msra.mxu0 0
        %1067 = vmatprep.subr.bf16.mxu0 0
        %1068 = vmatpush1.bf16.xpose.msra.mxu0 0
        %1069 = vmatprep.mubr.bf16.mxu0 0
        %1070 = vmatmul.mubr.bf16.gmra.mrb[0].mxu0 %v1029
        %v1071 = vpop.f32.mrb[0].mxu0
        %v1072 = vadd.f32 0.0, %v1071
        %v1073 = vpop.f32.mrb[0].mxu0
        %v1074 = vpop.f32.mrb[0].mxu0
        %v1075 = vadd.f32 0.0, %v1074
        %v1076 = vpop.f32.mrb[0].mxu0
        %1077 = vdwg.mxu0
        %v1078 = vsel %vm844, %v1072, -inf
        %1079 = vmax.xlane.f32.xlu0 %v1078
        %v1080 = vpop.xlane.xlu0 %1079
        %v1081 = vsel %vm844, %v1075, -inf
        %1082 = vmax.xlane.f32.xlu0 %v1081
        %v1083 = vpop.xlane.xlu0 %1082
        %v1084 = vsub.f32 %v1072, %v1080
        %v1085 = vsub.f32 %v1075, %v1083
        %v1086 = vpack.c.bf16 %v1085, %v1084
        %v1088 = vmul.bf16 %v1086, 1069105081
        %v1089 = vpow.bf16.pop %v1088
        %v1090 = vunpack.c.l.bf16 %v1089
        %v1091 = vunpack.c.h.bf16 %v1089
        %v1092 = vsel %vm844, %v1090, 0.0
        %1093 = vadd.xlane.f32.xlu0 %v1092
        %v1094 = vpop.xlane.xlu0 %1093
        %v1095 = vsel %vm844, %v1091, 0.0
        %1096 = vadd.xlane.f32.xlu0 %v1095
        %v1097 = vpop.xlane.xlu0 %1096
        %1100 = vrot.lane.b32.xlu0 %v1017, 120
        %v1101 = vpop.permute.xlu0 %1100
        %1102 = vrot.lane.b32.xlu0 %v1018, 120
        %v1103 = vpop.permute.xlu0 %1102
        %v1107 = vsel %vm844, %v1089, 0
        %1109 = vmatprep.subr.bf16.mxu0 0
        %1110 = vmatpush1.bf16.msra.mxu0 %v1101
        %1111 = vmatprep.subr.bf16.mxu0 0
        %1112 = vmatpush1.bf16.msra.mxu0 %v1103
        %1113 = vmatprep.subr.bf16.mxu0 0
        %1114 = vmatpush1.bf16.msra.mxu0 0
        %1115 = vmatprep.subr.bf16.mxu0 0
        %1116 = vmatpush1.bf16.msra.mxu0 0
        %1117 = vmatprep.subr.bf16.mxu0 0
        %1118 = vmatpush1.bf16.msra.mxu0 0
        %1119 = vmatprep.subr.bf16.mxu0 0
        %1120 = vmatpush1.bf16.msra.mxu0 0
        %1121 = vmatprep.subr.bf16.mxu0 0
        %1122 = vmatpush1.bf16.msra.mxu0 0
        %1123 = vmatprep.subr.bf16.mxu0 0
        %1124 = vmatpush1.bf16.msra.mxu0 0
        %1125 = vmatprep.subr.bf16.mxu0 0
        %1126 = vmatpush1.bf16.msra.mxu0 0
        %1127 = vmatprep.subr.bf16.mxu0 0
        %1128 = vmatpush1.bf16.msra.mxu0 0
        %1129 = vmatprep.subr.bf16.mxu0 0
        %1130 = vmatpush1.bf16.msra.mxu0 0
        %1131 = vmatprep.subr.bf16.mxu0 0
        %1132 = vmatpush1.bf16.msra.mxu0 0
        %1133 = vmatprep.subr.bf16.mxu0 0
        %1134 = vmatpush1.bf16.msra.mxu0 0
        %1135 = vmatprep.subr.bf16.mxu0 0
        %1136 = vmatpush1.bf16.msra.mxu0 0
        %1137 = vmatprep.subr.bf16.mxu0 0
        %1138 = vmatpush1.bf16.msra.mxu0 0
        %1139 = vmatprep.subr.bf16.mxu0 0
        %1140 = vmatpush1.bf16.msra.mxu0 0
        %1141 = vmatprep.mubr.bf16.mxu0 0
        %1142 = vmatmul.mubr.bf16.gmra.mrb[0].mxu0 %v1107
        %v1143 = vpop.f32.mrb[0].mxu0
        %v1144 = vadd.f32 0.0, %v1143
        %v1145 = vpop.f32.mrb[0].mxu0
        %v1146 = vpop.f32.mrb[0].mxu0
        %v1147 = vadd.f32 0.0, %v1146
        %v1148 = vpop.f32.mrb[0].mxu0
        %1149 = vdwg.mxu0
        %v1150 = vrcp.pop %v1094
        %v1151 = vrcp.pop %v1097
        %v1152 = vmul.f32 %v1144, %v1150
        %v1153 = vmul.f32 %v1147, %v1151
        %v1154 = vpack.c.bf16 %v1153, %v1152
        %1156 = vrot.lane.b32.xlu0 %v1154, 8
        %v1157 = vpop.permute.xlu0 %1156
        %vm1159 = vcmask 130112
        %1160 = vst.msk [vmem:[#allocation4] sm:$0xff] %vm1159, %v1157
        %v1161 = vld [vmem:[#allocation2] sm:$0xff]
        %v1162 = vld [vmem:[#allocation2 + $0x8] sm:$0xff]
        %v1163 = vld [vmem:[#allocation3] sm:$0xff]
        %v1164 = vld [vmem:[#allocation3 + $0x8] sm:$0xff]
        %1165 = vrot.lane.b32.xlu0 %v889, 112
        %v1166 = vpop.permute.xlu0 %1165
        %1169 = vrot.lane.b32.xlu0 %v1161, 112
        %v1170 = vpop.permute.xlu0 %1169
        %1171 = vrot.lane.b32.xlu0 %v1162, 112
        %v1172 = vpop.permute.xlu0 %1171
        %v1174 = vsel %vm894, %v1166, 0
        %v1177 = vsel %vm894, %v1170, 0
        %v1180 = vsel %vm894, %v1172, 0
        %1182 = vmatprep.subr.bf16.mxu0 0
        %1183 = vmatpush1.bf16.xpose.msra.mxu0 %v1177
        %1184 = vmatprep.subr.bf16.mxu0 0
        %1185 = vmatpush1.bf16.xpose.msra.mxu0 %v1180
        %1186 = vmatprep.subr.bf16.mxu0 0
        %1187 = vmatpush1.bf16.xpose.msra.mxu0 0
        %1188 = vmatprep.subr.bf16.mxu0 0
        %1189 = vmatpush1.bf16.xpose.msra.mxu0 0
        %1190 = vmatprep.subr.bf16.mxu0 0
        %1191 = vmatpush1.bf16.xpose.msra.mxu0 0
        %1192 = vmatprep.subr.bf16.mxu0 0
        %1193 = vmatpush1.bf16.xpose.msra.mxu0 0
        %1194 = vmatprep.subr.bf16.mxu0 0
        %1195 = vmatpush1.bf16.xpose.msra.mxu0 0
        %1196 = vmatprep.subr.bf16.mxu0 0
        %1197 = vmatpush1.bf16.xpose.msra.mxu0 0
        %1198 = vmatprep.subr.bf16.mxu0 0
        %1199 = vmatpush1.bf16.xpose.msra.mxu0 0
        %1200 = vmatprep.subr.bf16.mxu0 0
        %1201 = vmatpush1.bf16.xpose.msra.mxu0 0
        %1202 = vmatprep.subr.bf16.mxu0 0
        %1203 = vmatpush1.bf16.xpose.msra.mxu0 0
        %1204 = vmatprep.subr.bf16.mxu0 0
        %1205 = vmatpush1.bf16.xpose.msra.mxu0 0
        %1206 = vmatprep.subr.bf16.mxu0 0
        %1207 = vmatpush1.bf16.xpose.msra.mxu0 0
        %1208 = vmatprep.subr.bf16.mxu0 0
        %1209 = vmatpush1.bf16.xpose.msra.mxu0 0
        %1210 = vmatprep.subr.bf16.mxu0 0
        %1211 = vmatpush1.bf16.xpose.msra.mxu0 0
        %1212 = vmatprep.subr.bf16.mxu0 0
        %1213 = vmatpush1.bf16.xpose.msra.mxu0 0
        %1214 = vmatprep.mubr.bf16.mxu0 0
        %1215 = vmatmul.mubr.bf16.gmra.mrb[0].mxu0 %v1174
        %v1216 = vpop.f32.mrb[0].mxu0
        %v1217 = vadd.f32 0.0, %v1216
        %v1218 = vpop.f32.mrb[0].mxu0
        %v1219 = vpop.f32.mrb[0].mxu0
        %v1220 = vadd.f32 0.0, %v1219
        %v1221 = vpop.f32.mrb[0].mxu0
        %1222 = vdwg.mxu0
        %v1223 = vsel %vm844, %v1217, -inf
        %1224 = vmax.xlane.f32.xlu0 %v1223
        %v1225 = vpop.xlane.xlu0 %1224
        %v1226 = vsel %vm844, %v1220, -inf
        %1227 = vmax.xlane.f32.xlu0 %v1226
        %v1228 = vpop.xlane.xlu0 %1227
        %v1229 = vsub.f32 %v1217, %v1225
        %v1230 = vsub.f32 %v1220, %v1228
        %v1231 = vpack.c.bf16 %v1230, %v1229
        %v1233 = vmul.bf16 %v1231, 1069105081
        %v1234 = vpow.bf16.pop %v1233
        %v1235 = vunpack.c.l.bf16 %v1234
        %v1236 = vunpack.c.h.bf16 %v1234
        %v1237 = vsel %vm844, %v1235, 0.0
        %1238 = vadd.xlane.f32.xlu0 %v1237
        %v1239 = vpop.xlane.xlu0 %1238
        %v1240 = vsel %vm844, %v1236, 0.0
        %1241 = vadd.xlane.f32.xlu0 %v1240
        %v1242 = vpop.xlane.xlu0 %1241
        %1245 = vrot.lane.b32.xlu0 %v1163, 112
        %v1246 = vpop.permute.xlu0 %1245
        %1247 = vrot.lane.b32.xlu0 %v1164, 112
        %v1248 = vpop.permute.xlu0 %1247
        %v1252 = vsel %vm844, %v1234, 0
        %1254 = vmatprep.subr.bf16.mxu0 0
        %1255 = vmatpush1.bf16.msra.mxu0 %v1246
        %1256 = vmatprep.subr.bf16.mxu0 0
        %1257 = vmatpush1.bf16.msra.mxu0 %v1248
        %1258 = vmatprep.subr.bf16.mxu0 0
        %1259 = vmatpush1.bf16.msra.mxu0 0
        %1260 = vmatprep.subr.bf16.mxu0 0
        %1261 = vmatpush1.bf16.msra.mxu0 0
        %1262 = vmatprep.subr.bf16.mxu0 0
        %1263 = vmatpush1.bf16.msra.mxu0 0
        %1264 = vmatprep.subr.bf16.mxu0 0
        %1265 = vmatpush1.bf16.msra.mxu0 0
        %1266 = vmatprep.subr.bf16.mxu0 0
        %1267 = vmatpush1.bf16.msra.mxu0 0
        %1268 = vmatprep.subr.bf16.mxu0 0
        %1269 = vmatpush1.bf16.msra.mxu0 0
        %1270 = vmatprep.subr.bf16.mxu0 0
        %1271 = vmatpush1.bf16.msra.mxu0 0
        %1272 = vmatprep.subr.bf16.mxu0 0
        %1273 = vmatpush1.bf16.msra.mxu0 0
        %1274 = vmatprep.subr.bf16.mxu0 0
        %1275 = vmatpush1.bf16.msra.mxu0 0
        %1276 = vmatprep.subr.bf16.mxu0 0
        %1277 = vmatpush1.bf16.msra.mxu0 0
        %1278 = vmatprep.subr.bf16.mxu0 0
        %1279 = vmatpush1.bf16.msra.mxu0 0
        %1280 = vmatprep.subr.bf16.mxu0 0
        %1281 = vmatpush1.bf16.msra.mxu0 0
        %1282 = vmatprep.subr.bf16.mxu0 0
        %1283 = vmatpush1.bf16.msra.mxu0 0
        %1284 = vmatprep.subr.bf16.mxu0 0
        %1285 = vmatpush1.bf16.msra.mxu0 0
        %1286 = vmatprep.mubr.bf16.mxu0 0
        %1287 = vmatmul.mubr.bf16.gmra.mrb[0].mxu0 %v1252
        %v1288 = vpop.f32.mrb[0].mxu0
        %v1289 = vadd.f32 0.0, %v1288
        %v1290 = vpop.f32.mrb[0].mxu0
        %v1291 = vpop.f32.mrb[0].mxu0
        %v1292 = vadd.f32 0.0, %v1291
        %v1293 = vpop.f32.mrb[0].mxu0
        %1294 = vdwg.mxu0
        %v1295 = vrcp.pop %v1239
        %v1296 = vrcp.pop %v1242
        %v1297 = vmul.f32 %v1289, %v1295
        %v1298 = vmul.f32 %v1292, %v1296
        %v1299 = vpack.c.bf16 %v1298, %v1297
        %1301 = vrot.lane.b32.xlu0 %v1299, 16
        %v1302 = vpop.permute.xlu0 %1301
        %vm1304 = vcmask 195712
        %1305 = vst.msk [vmem:[#allocation4] sm:$0xff] %vm1304, %v1302
        %v1306 = vld [vmem:[#allocation2] sm:$0xff]
        %v1307 = vld [vmem:[#allocation2 + $0x8] sm:$0xff]
        %v1308 = vld [vmem:[#allocation3] sm:$0xff]
        %v1309 = vld [vmem:[#allocation3 + $0x8] sm:$0xff]
        %1310 = vrot.lane.b32.xlu0 %v889, 104
        %v1311 = vpop.permute.xlu0 %1310
        %1314 = vrot.lane.b32.xlu0 %v1306, 104
        %v1315 = vpop.permute.xlu0 %1314
        %1316 = vrot.lane.b32.xlu0 %v1307, 104
        %v1317 = vpop.permute.xlu0 %1316
        %v1319 = vsel %vm894, %v1311, 0
        %v1322 = vsel %vm894, %v1315, 0
        %v1325 = vsel %vm894, %v1317, 0
        %1327 = vmatprep.subr.bf16.mxu0 0
        %1328 = vmatpush1.bf16.xpose.msra.mxu0 %v1322
        %1329 = vmatprep.subr.bf16.mxu0 0
        %1330 = vmatpush1.bf16.xpose.msra.mxu0 %v1325
        %1331 = vmatprep.subr.bf16.mxu0 0
        %1332 = vmatpush1.bf16.xpose.msra.mxu0 0
        %1333 = vmatprep.subr.bf16.mxu0 0
        %1334 = vmatpush1.bf16.xpose.msra.mxu0 0
        %1335 = vmatprep.subr.bf16.mxu0 0
        %1336 = vmatpush1.bf16.xpose.msra.mxu0 0
        %1337 = vmatprep.subr.bf16.mxu0 0
        %1338 = vmatpush1.bf16.xpose.msra.mxu0 0
        %1339 = vmatprep.subr.bf16.mxu0 0
        %1340 = vmatpush1.bf16.xpose.msra.mxu0 0
        %1341 = vmatprep.subr.bf16.mxu0 0
        %1342 = vmatpush1.bf16.xpose.msra.mxu0 0
        %1343 = vmatprep.subr.bf16.mxu0 0
        %1344 = vmatpush1.bf16.xpose.msra.mxu0 0
        %1345 = vmatprep.subr.bf16.mxu0 0
        %1346 = vmatpush1.bf16.xpose.msra.mxu0 0
        %1347 = vmatprep.subr.bf16.mxu0 0
        %1348 = vmatpush1.bf16.xpose.msra.mxu0 0
        %1349 = vmatprep.subr.bf16.mxu0 0
        %1350 = vmatpush1.bf16.xpose.msra.mxu0 0
        %1351 = vmatprep.subr.bf16.mxu0 0
        %1352 = vmatpush1.bf16.xpose.msra.mxu0 0
        %1353 = vmatprep.subr.bf16.mxu0 0
        %1354 = vmatpush1.bf16.xpose.msra.mxu0 0
        %1355 = vmatprep.subr.bf16.mxu0 0
        %1356 = vmatpush1.bf16.xpose.msra.mxu0 0
        %1357 = vmatprep.subr.bf16.mxu0 0
        %1358 = vmatpush1.bf16.xpose.msra.mxu0 0
        %1359 = vmatprep.mubr.bf16.mxu0 0
        %1360 = vmatmul.mubr.bf16.gmra.mrb[0].mxu0 %v1319
        %v1361 = vpop.f32.mrb[0].mxu0
        %v1362 = vadd.f32 0.0, %v1361
        %v1363 = vpop.f32.mrb[0].mxu0
        %v1364 = vpop.f32.mrb[0].mxu0
        %v1365 = vadd.f32 0.0, %v1364
        %v1366 = vpop.f32.mrb[0].mxu0
        %1367 = vdwg.mxu0
        %v1368 = vsel %vm844, %v1362, -inf
        %1369 = vmax.xlane.f32.xlu0 %v1368
        %v1370 = vpop.xlane.xlu0 %1369
        %v1371 = vsel %vm844, %v1365, -inf
        %1372 = vmax.xlane.f32.xlu0 %v1371
        %v1373 = vpop.xlane.xlu0 %1372
        %v1374 = vsub.f32 %v1362, %v1370
        %v1375 = vsub.f32 %v1365, %v1373
        %v1376 = vpack.c.bf16 %v1375, %v1374
        %v1378 = vmul.bf16 %v1376, 1069105081
        %v1379 = vpow.bf16.pop %v1378
        %v1380 = vunpack.c.l.bf16 %v1379
        %v1381 = vunpack.c.h.bf16 %v1379
        %v1382 = vsel %vm844, %v1380, 0.0
        %1383 = vadd.xlane.f32.xlu0 %v1382
        %v1384 = vpop.xlane.xlu0 %1383
        %v1385 = vsel %vm844, %v1381, 0.0
        %1386 = vadd.xlane.f32.xlu0 %v1385
        %v1387 = vpop.xlane.xlu0 %1386
        %1390 = vrot.lane.b32.xlu0 %v1308, 104
        %v1391 = vpop.permute.xlu0 %1390
        %1392 = vrot.lane.b32.xlu0 %v1309, 104
        %v1393 = vpop.permute.xlu0 %1392
        %v1397 = vsel %vm844, %v1379, 0
        %1399 = vmatprep.subr.bf16.mxu0 0
        %1400 = vmatpush1.bf16.msra.mxu0 %v1391
        %1401 = vmatprep.subr.bf16.mxu0 0
        %1402 = vmatpush1.bf16.msra.mxu0 %v1393
        %1403 = vmatprep.subr.bf16.mxu0 0
        %1404 = vmatpush1.bf16.msra.mxu0 0
        %1405 = vmatprep.subr.bf16.mxu0 0
        %1406 = vmatpush1.bf16.msra.mxu0 0
        %1407 = vmatprep.subr.bf16.mxu0 0
        %1408 = vmatpush1.bf16.msra.mxu0 0
        %1409 = vmatprep.subr.bf16.mxu0 0
        %1410 = vmatpush1.bf16.msra.mxu0 0
        %1411 = vmatprep.subr.bf16.mxu0 0
        %1412 = vmatpush1.bf16.msra.mxu0 0
        %1413 = vmatprep.subr.bf16.mxu0 0
        %1414 = vmatpush1.bf16.msra.mxu0 0
        %1415 = vmatprep.subr.bf16.mxu0 0
        %1416 = vmatpush1.bf16.msra.mxu0 0
        %1417 = vmatprep.subr.bf16.mxu0 0
        %1418 = vmatpush1.bf16.msra.mxu0 0
        %1419 = vmatprep.subr.bf16.mxu0 0
        %1420 = vmatpush1.bf16.msra.mxu0 0
        %1421 = vmatprep.subr.bf16.mxu0 0
        %1422 = vmatpush1.bf16.msra.mxu0 0
        %1423 = vmatprep.subr.bf16.mxu0 0
        %1424 = vmatpush1.bf16.msra.mxu0 0
        %1425 = vmatprep.subr.bf16.mxu0 0
        %1426 = vmatpush1.bf16.msra.mxu0 0
        %1427 = vmatprep.subr.bf16.mxu0 0
        %1428 = vmatpush1.bf16.msra.mxu0 0
        %1429 = vmatprep.subr.bf16.mxu0 0
        %1430 = vmatpush1.bf16.msra.mxu0 0
        %1431 = vmatprep.mubr.bf16.mxu0 0
        %1432 = vmatmul.mubr.bf16.gmra.mrb[0].mxu0 %v1397
        %v1433 = vpop.f32.mrb[0].mxu0
        %v1434 = vadd.f32 0.0, %v1433
        %v1435 = vpop.f32.mrb[0].mxu0
        %v1436 = vpop.f32.mrb[0].mxu0
        %v1437 = vadd.f32 0.0, %v1436
        %v1438 = vpop.f32.mrb[0].mxu0
        %1439 = vdwg.mxu0
        %v1440 = vrcp.pop %v1384
        %v1441 = vrcp.pop %v1387
        %v1442 = vmul.f32 %v1434, %v1440
        %v1443 = vmul.f32 %v1437, %v1441
        %v1444 = vpack.c.bf16 %v1443, %v1442
        %1446 = vrot.lane.b32.xlu0 %v1444, 24
        %v1447 = vpop.permute.xlu0 %1446
        %vm1449 = vcmask 261312
        %1450 = vst.msk [vmem:[#allocation4] sm:$0xff] %vm1449, %v1447
        %v1451 = vld [vmem:[#allocation4] sm:$0xff]
        %v1452 = vld [vmem:[#allocation13] sm:$0xf]
        %v1453 = vld [vmem:[#allocation13 + $0x4] sm:$0xf]
        %v1454 = vld [vmem:[#allocation13 + $0x8] sm:$0xf]
        %v1455 = vld [vmem:[#allocation13 + $0xc] sm:$0xf]
        %v1456 = vld [vmem:[#allocation14] sm:$0x1]
        %v1458 = vlaneseq
        %v1459 = vshrl.u32 %v1458, 7
        %v1460 = vsub.s32 0, %v1459
        %v1461 = vrot.slane %v1456, %v1460
        %v1467 = vunpack.c.l.b16 %v1452
        %v1468 = vunpack.c.l.b16 %v1453
        %v1469 = vunpack.c.l.b16 %v1454
        %v1470 = vunpack.c.l.b16 %v1455
        %v1471 = vpack.c.b16 %v1468, %v1467
        %v1472 = vpack.c.b16 %v1470, %v1469
        %v1476 = vsel %vm844, %v1451, 0
        %1478 = vmatprep.subr.bf16.mxu0 0
        %1479 = vmatpush1.bf16.msra.mxu0 %v1471
        %1480 = vmatprep.subr.bf16.mxu0 0
        %1481 = vmatpush1.bf16.msra.mxu0 %v1472
        %1482 = vmatprep.subr.bf16.mxu0 0
        %1483 = vmatpush1.bf16.msra.mxu0 0
        %1484 = vmatprep.subr.bf16.mxu0 0
        %1485 = vmatpush1.bf16.msra.mxu0 0
        %1486 = vmatprep.subr.bf16.mxu0 0
        %1487 = vmatpush1.bf16.msra.mxu0 0
        %1488 = vmatprep.subr.bf16.mxu0 0
        %1489 = vmatpush1.bf16.msra.mxu0 0
        %1490 = vmatprep.subr.bf16.mxu0 0
        %1491 = vmatpush1.bf16.msra.mxu0 0
        %1492 = vmatprep.subr.bf16.mxu0 0
        %1493 = vmatpush1.bf16.msra.mxu0 0
        %1494 = vmatprep.subr.bf16.mxu0 0
        %1495 = vmatpush1.bf16.msra.mxu0 0
        %1496 = vmatprep.subr.bf16.mxu0 0
        %1497 = vmatpush1.bf16.msra.mxu0 0
        %1498 = vmatprep.subr.bf16.mxu0 0
        %1499 = vmatpush1.bf16.msra.mxu0 0
        %1500 = vmatprep.subr.bf16.mxu0 0
        %1501 = vmatpush1.bf16.msra.mxu0 0
        %1502 = vmatprep.subr.bf16.mxu0 0
        %1503 = vmatpush1.bf16.msra.mxu0 0
        %1504 = vmatprep.subr.bf16.mxu0 0
        %1505 = vmatpush1.bf16.msra.mxu0 0
        %1506 = vmatprep.subr.bf16.mxu0 0
        %1507 = vmatpush1.bf16.msra.mxu0 0
        %1508 = vmatprep.subr.bf16.mxu0 0
        %1509 = vmatpush1.bf16.msra.mxu0 0
        %1510 = vmatprep.mubr.bf16.mxu0 0
        %1511 = vmatmul.mubr.bf16.gmra.mrb[0].mxu0 %v1476
        %v1512 = vpop.f32.mrb[0].mxu0
        %v1513 = vadd.f32 %v1461, %v1512
        %v1514 = vpop.f32.mrb[0].mxu0
        %v1515 = vpop.f32.mrb[0].mxu0
        %v1516 = vadd.f32 %v1461, %v1515
        %v1517 = vpop.f32.mrb[0].mxu0
        %1518 = vdwg.mxu0
        %v1519 = vld [vmem:[%s10] sm:$0xf]
        %v1520 = vld [vmem:[%s10 + $0x4] sm:$0xf]
        %v1521 = vld [vmem:[%s10 + $0x8] sm:$0xf]
        %v1522 = vld [vmem:[%s10 + $0xc] sm:$0xf]
        %v1523 = vpack.c.bf16 %v1516, %v1513
        %v1524 = vld [vmem:[#allocation16] sm:$0xf]
        %v1525 = vld [vmem:[#allocation16 + $0x4] sm:$0xf]
        %v1526 = vld [vmem:[#allocation16 + $0x8] sm:$0xf]
        %v1527 = vld [vmem:[#allocation16 + $0xc] sm:$0xf]
        %v1532 = vunpack.c.l.b16 %v1524
        %v1533 = vunpack.c.l.b16 %v1525
        %v1534 = vunpack.c.l.b16 %v1526
        %v1535 = vunpack.c.l.b16 %v1527
        %v1536 = vpack.c.b16 %v1533, %v1532
        %v1537 = vpack.c.b16 %v1535, %v1534
        %v1541 = vsel %vm844, %v1523, 0
        %1543 = vmatprep.subr.bf16.mxu0 0
        %1544 = vmatpush1.bf16.msra.mxu0 %v1536
        %1545 = vmatprep.subr.bf16.mxu0 0
        %1546 = vmatpush1.bf16.msra.mxu0 %v1537
        %1547 = vmatprep.subr.bf16.mxu0 0
        %1548 = vmatpush1.bf16.msra.mxu0 0
        %1549 = vmatprep.subr.bf16.mxu0 0
        %1550 = vmatpush1.bf16.msra.mxu0 0
        %1551 = vmatprep.subr.bf16.mxu0 0
        %1552 = vmatpush1.bf16.msra.mxu0 0
        %1553 = vmatprep.subr.bf16.mxu0 0
        %1554 = vmatpush1.bf16.msra.mxu0 0
        %1555 = vmatprep.subr.bf16.mxu0 0
        %1556 = vmatpush1.bf16.msra.mxu0 0
        %1557 = vmatprep.subr.bf16.mxu0 0
        %1558 = vmatpush1.bf16.msra.mxu0 0
        %1559 = vmatprep.subr.bf16.mxu0 0
        %1560 = vmatpush1.bf16.msra.mxu0 0
        %1561 = vmatprep.subr.bf16.mxu0 0
        %1562 = vmatpush1.bf16.msra.mxu0 0
        %1563 = vmatprep.subr.bf16.mxu0 0
        %1564 = vmatpush1.bf16.msra.mxu0 0
        %1565 = vmatprep.subr.bf16.mxu0 0
        %1566 = vmatpush1.bf16.msra.mxu0 0
        %1567 = vmatprep.subr.bf16.mxu0 0
        %1568 = vmatpush1.bf16.msra.mxu0 0
        %1569 = vmatprep.subr.bf16.mxu0 0
        %1570 = vmatpush1.bf16.msra.mxu0 0
        %1571 = vmatprep.subr.bf16.mxu0 0
        %1572 = vmatpush1.bf16.msra.mxu0 0
        %1573 = vmatprep.subr.bf16.mxu0 0
        %1574 = vmatpush1.bf16.msra.mxu0 0
        %1575 = vmatprep.mubr.bf16.mxu0 0
        %1576 = vmatmul.mubr.bf16.gmra.mrb[0].mxu0 %v1541
        %v1577 = vpop.f32.mrb[0].mxu0
        %v1578 = vadd.f32 0.0, %v1577
        %v1579 = vpop.f32.mrb[0].mxu0
        %v1580 = vpop.f32.mrb[0].mxu0
        %v1581 = vadd.f32 0.0, %v1580
        %v1582 = vpop.f32.mrb[0].mxu0
        %1583 = vdwg.mxu0
        %v1588 = vunpack.c.l.b16 %v1519
        %v1589 = vunpack.c.l.b16 %v1520
        %v1590 = vunpack.c.l.b16 %v1521
        %v1591 = vunpack.c.l.b16 %v1522
        %v1592 = vpack.c.b16 %v1589, %v1588
        %v1593 = vpack.c.b16 %v1591, %v1590
        %1596 = vmatprep.subr.bf16.mxu0 0
        %1597 = vmatpush1.bf16.msra.mxu0 %v1592
        %1598 = vmatprep.subr.bf16.mxu0 0
        %1599 = vmatpush1.bf16.msra.mxu0 %v1593
        %1600 = vmatprep.subr.bf16.mxu0 0
        %1601 = vmatpush1.bf16.msra.mxu0 0
        %1602 = vmatprep.subr.bf16.mxu0 0
        %1603 = vmatpush1.bf16.msra.mxu0 0
        %1604 = vmatprep.subr.bf16.mxu0 0
        %1605 = vmatpush1.bf16.msra.mxu0 0
        %1606 = vmatprep.subr.bf16.mxu0 0
        %1607 = vmatpush1.bf16.msra.mxu0 0
        %1608 = vmatprep.subr.bf16.mxu0 0
        %1609 = vmatpush1.bf16.msra.mxu0 0
        %1610 = vmatprep.subr.bf16.mxu0 0
        %1611 = vmatpush1.bf16.msra.mxu0 0
        %1612 = vmatprep.subr.bf16.mxu0 0
        %1613 = vmatpush1.bf16.msra.mxu0 0
        %1614 = vmatprep.subr.bf16.mxu0 0
        %1615 = vmatpush1.bf16.msra.mxu0 0
        %1616 = vmatprep.subr.bf16.mxu0 0
        %1617 = vmatpush1.bf16.msra.mxu0 0
        %1618 = vmatprep.subr.bf16.mxu0 0
        %1619 = vmatpush1.bf16.msra.mxu0 0
        %1620 = vmatprep.subr.bf16.mxu0 0
        %1621 = vmatpush1.bf16.msra.mxu0 0
        %1622 = vmatprep.subr.bf16.mxu0 0
        %1623 = vmatpush1.bf16.msra.mxu0 0
        %1624 = vmatprep.subr.bf16.mxu0 0
        %1625 = vmatpush1.bf16.msra.mxu0 0
        %1626 = vmatprep.subr.bf16.mxu0 0
        %1627 = vmatpush1.bf16.msra.mxu0 0
        %1628 = vmatprep.mubr.bf16.mxu0 0
        %1629 = vmatmul.mubr.bf16.gmra.mrb[0].mxu0 %v846
        %v1630 = vpop.f32.mrb[0].mxu0
        %v1631 = vadd.f32 %v1578, %v1630
        %v1632 = vpop.f32.mrb[0].mxu0
        %v1633 = vpop.f32.mrb[0].mxu0
        %v1634 = vadd.f32 %v1581, %v1633
        %v1635 = vpop.f32.mrb[0].mxu0
        %1636 = vdwg.mxu0
        %v1637 = vld [vmem:[%s12] sm:$0x1]
        %v1639 = vlaneseq
        %v1640 = vshrl.u32 %v1639, 7
        %v1641 = vsub.s32 0, %v1640
        %v1642 = vrot.slane %v1637, %v1641
        %v1644 = vadd.f32 %v1631, %v1642
        %v1645 = vadd.f32 %v1634, %v1642
        %v1646 = vmax.f32 %v1644, 0.0
        %v1647 = vmax.f32 %v1645, 0.0
        %v1648 = vpack.c.bf16 %v1647, %v1646
        %v1649 = vld [vmem:[%s13] sm:$0xf]
        %v1650 = vld [vmem:[%s13 + $0x4] sm:$0xf]
        %v1651 = vld [vmem:[%s13 + $0x8] sm:$0xf]
        %v1652 = vld [vmem:[%s13 + $0xc] sm:$0xf]
        %v1653 = vld [vmem:[%s13 + $0x10] sm:$0xf]
        %v1654 = vld [vmem:[%s13 + $0x14] sm:$0xf]
        %v1655 = vld [vmem:[%s13 + $0x18] sm:$0xf]
        %v1656 = vld [vmem:[%s13 + $0x1c] sm:$0xf]
        %v1657 = vld [vmem:[%s14] sm:$0x1]
        %v1659 = vlaneseq
        %v1660 = vshrl.u32 %v1659, 7
        %v1661 = vsub.s32 0, %v1660
        %v1662 = vrot.slane %v1657, %v1661
        %v1672 = vunpack.c.l.b16 %v1649
        %v1673 = vunpack.c.l.b16 %v1650
        %v1674 = vunpack.c.l.b16 %v1651
        %v1675 = vunpack.c.l.b16 %v1652
        %v1676 = vunpack.c.l.b16 %v1653
        %v1677 = vunpack.c.l.b16 %v1654
        %v1678 = vunpack.c.l.b16 %v1655
        %v1679 = vunpack.c.l.b16 %v1656
        %v1680 = vpack.c.b16 %v1673, %v1672
        %v1681 = vpack.c.b16 %v1675, %v1674
        %v1682 = vpack.c.b16 %v1677, %v1676
        %v1683 = vpack.c.b16 %v1679, %v1678
        %vm1688 = vcmask 523264
        %v1690 = vsel %vm1688, %v1648, 0
        %1692 = vmatprep.subr.bf16.mxu0 0
        %1693 = vmatpush1.bf16.msra.mxu0 %v1680
        %1694 = vmatprep.subr.bf16.mxu0 0
        %1695 = vmatpush1.bf16.msra.mxu0 %v1681
        %1696 = vmatprep.subr.bf16.mxu0 0
        %1697 = vmatpush1.bf16.msra.mxu0 %v1682
        %1698 = vmatprep.subr.bf16.mxu0 0
        %1699 = vmatpush1.bf16.msra.mxu0 %v1683
        %1700 = vmatprep.subr.bf16.mxu0 0
        %1701 = vmatpush1.bf16.msra.mxu0 0
        %1702 = vmatprep.subr.bf16.mxu0 0
        %1703 = vmatpush1.bf16.msra.mxu0 0
        %1704 = vmatprep.subr.bf16.mxu0 0
        %1705 = vmatpush1.bf16.msra.mxu0 0
        %1706 = vmatprep.subr.bf16.mxu0 0
        %1707 = vmatpush1.bf16.msra.mxu0 0
        %1708 = vmatprep.subr.bf16.mxu0 0
        %1709 = vmatpush1.bf16.msra.mxu0 0
        %1710 = vmatprep.subr.bf16.mxu0 0
        %1711 = vmatpush1.bf16.msra.mxu0 0
        %1712 = vmatprep.subr.bf16.mxu0 0
        %1713 = vmatpush1.bf16.msra.mxu0 0
        %1714 = vmatprep.subr.bf16.mxu0 0
        %1715 = vmatpush1.bf16.msra.mxu0 0
        %1716 = vmatprep.subr.bf16.mxu0 0
        %1717 = vmatpush1.bf16.msra.mxu0 0
        %1718 = vmatprep.subr.bf16.mxu0 0
        %1719 = vmatpush1.bf16.msra.mxu0 0
        %1720 = vmatprep.subr.bf16.mxu0 0
        %1721 = vmatpush1.bf16.msra.mxu0 0
        %1722 = vmatprep.subr.bf16.mxu0 0
        %1723 = vmatpush1.bf16.msra.mxu0 0
        %1724 = vmatprep.mubr.bf16.mxu0 0
        %1725 = vmatmul.mubr.bf16.gmra.mrb[0].mxu0 %v1690
        %v1726 = vpop.f32.mrb[0].mxu0
        %v1727 = vadd.f32 %v1662, %v1726
        %v1728 = vpop.f32.mrb[0].mxu0
        %v1729 = vpop.f32.mrb[0].mxu0
        %v1730 = vadd.f32 %v1662, %v1729
        %v1731 = vpop.f32.mrb[0].mxu0
        %1732 = vdwg.mxu0
        %1733 = vst.msk [vmem:[%s628] sm:$0xff] %vm844, %v1727
        %1734 = vst.msk [vmem:[%s628 + $0x8] sm:$0xff] %vm844, %v1730
        %s1735 = sand.u32 %s384, 1
        %s1736 = scalar_lea.sflag [#allocation7], %s1735
        %s1737 = sand.u32 %s384, 1
        %s1738 = smul.addr %s1737, 16
        %s1739 = scalar_lea.vmem [#allocation17], %s1738
        // Predicated region
        $region113: #{tpu_custom_call.1} parent=79 // pred_check
          %p1740 = pneg %p394
        $region114: #{tpu_custom_call.1} parent=79 // pred_check_branch
          %1742 = sbr.rel (%p1740) target = $region116
        $region115: #{tpu_custom_call.1} parent=79 // pred_region
          %s1743 = smul.u32 2, %s40
          %s1745 = ssub.s32 256, 256
          %1746 = vsyncadd %s1736, %s1745
          %s1747 = smul.addr %s39, 4
          %s1748 = sadd.s32 %s1743, %s1747
          %s1749 = smul.addr %s1748, 128
          %s1750 = scalar_lea.hbm %s15, %s1749
          %s1751 = sshll.u32 %s1739, 4
          %s1752 = int_to_ptr.vmem [resolvable:$true] %s1751
          %1757 = dma.vmem_to_hbm [thread:$0]  %s1752, 256, %s1750, %s1736, 128, 128, 8
        $region116: #{tpu_custom_call.1} parent=79 // pred_fallthru
          _
      $region80: #{tpu_custom_call.1} parent=5 // pred_fallthru
        _
      %p1758 = scmp.le.s32.totalorder 2, %s30
      // Predicated region
      $region117: #{tpu_custom_call.1} parent=5 // pred_check
        %p1759 = pneg %p1758
      $region118: #{tpu_custom_call.1} parent=5 // pred_check_branch
        %1761 = sbr.rel (%p1759) target = $region120
      $region119: #{tpu_custom_call.1} parent=5 // pred_region
        %s1762 = ssub.s32 %s30, 2
        // Predicated region
        $region121: #{tpu_custom_call.1} parent=119 // pred_check
          %p1763 = pneg %p400
        $region122: #{tpu_custom_call.1} parent=119 // pred_check_branch
          %1765 = sbr.rel (%p1763) target = $region124
        $region123: #{tpu_custom_call.1} parent=119 // pred_region
          %s1766 = sand.u32 %s385, 1
          %s1767 = scalar_lea.sflag [#allocation7], %s1766
          %s1768 = sand.u32 %s385, 1
          %s1769 = smul.addr %s1768, 16
          %s1770 = scalar_lea.vmem [#allocation17], %s1769
          %1771 = dma.done %s1767, 256
        $region124: #{tpu_custom_call.1} parent=119 // pred_fallthru
          _
      $region120: #{tpu_custom_call.1} parent=5 // pred_fallthru
        _
    $region6: #{tpu_custom_call.1} parent=1 // loop_footer
      %s34 = sadd.s32 1, %s30
    $region7: #{tpu_custom_call.1} parent=1 // loop_footer_branch
      %29 = sbr.rel target = $region3
    $region8: #{tpu_custom_call.1} parent=1 // loop_exit
      _
    %1772 = vsyncpa [#allocation6], 1
    %s1773 = scalar_lea.sflag [#allocation6], 1
    %1774 = vsyncpa %s1773, 1
    %1775 = vsyncpa [#allocation9], 1
    %1776 = vsyncpa [#allocation12], 1
    %1777 = vsyncpa [#allocation15], 1
    %1778 = vsyncpa [#allocation7], 1
    %s1779 = scalar_lea.sflag [#allocation7], 1
    %1780 = vsyncpa %s1779, 1

</llo_original>
